<compile_context>
chip_gen: v7x
topology: tpu7x:2x2x1
jax: 0.10.0
libtpu: 0.0.40
codegen_flags: <defaults>
</compile_context>

<pallas_src>
import jax
import jax.numpy as jnp
from jax.experimental import pallas as pl
from jax.experimental.pallas import tpu as pltpu

LANE = 128


# ----------------------------------------------------------------------------
# Fused Pallas kernel: all TemporalBlocks + decoder for one row-tile
# ----------------------------------------------------------------------------
def _make_fused_tcn_kernel(rows, T, block_meta, dec_bias_row, out_pad):
    """rows = tile_b * T flattened rows per grid step (whole batch elements).

    block_meta: tuple of (dilation, use_ds, cin, cout, r_b1, r_bd, r_b2) — static.
    Ref order: x (rows,E), bias_pack (n_bias,W), [w1s, w2s] per block (bf16),
               dec_w_pad (H, out_pad) bf16, output (rows, out_pad) f32.
    """
    BT = rows

    def kernel(x_ref, bias_ref, *rest):
        o_ref = rest[-1]
        dec_w_ref = rest[-2]
        w_refs = rest[:-2]

        biases = bias_ref[...]                                  # (n_bias, W) f32

        # Time-within-batch index of each flattened row: masks the causal roll
        # so neither batch boundaries nor the roll wrap-around ever leak.
        row = jax.lax.broadcasted_iota(jnp.int32, (BT, 1), 0)
        if (T & (T - 1)) == 0:
            t_in_b = jnp.bitwise_and(row, T - 1)                # power-of-two mod
        else:
            t_in_b = row % T

        def causal_shift(v, d):
            # per-batch v[t-d], zero-filled where t < d.   [R6]
            if d >= T:                                          # whole row is pad
                return jnp.zeros_like(v)
            rolled = pltpu.roll(v, shift=d, axis=0)             # XLU sublane rotate
            return jnp.where(t_in_b >= d, rolled, 0.0)

        x = x_ref[...].astype(jnp.float32)                      # (rows, E) f32 epilogue path
        wi = 0
        for (d, use_ds, cin, cout, r_b1, r_bd, r_b2) in block_meta:
            w1s = w_refs[wi][...]                               # bf16 stacked taps
            w2s = w_refs[wi + 1][...]
            wi += 2
            b1 = biases[r_b1:r_b1 + 1, :cout]
            b2 = biases[r_b2:r_b2 + 1, :cout]

            # conv1 (+ fused 1x1 downsample when present), one MXU matmul:
            #   LHS = [x | x_{t-d}]                     (rows, 2*Cin)  bf16
            #   RHS = [[W1_k1, Wd], [W1_k0, 0]]         (2*Cin, 2*Cout) or (2*Cin, Cout)
            lhs1 = jnp.concatenate([x, causal_shift(x, d)], axis=1)
            o1 = jnp.dot(lhs1.astype(jnp.bfloat16), w1s,
                         preferred_element_type=jnp.float32)    # [R1]
            if use_ds:
                bd = biases[r_bd:r_bd + 1, :cout]
                h1 = jnp.maximum(o1[:, :cout] + b1, 0.0)        # relu1
                res = o1[:, cout:] + bd                         # 1x1 downsample
            else:
                h1 = jnp.maximum(o1 + b1, 0.0)                  # relu1
                res = x                                         # identity residual

            # conv2, same stacked-tap single matmul.
            lhs2 = jnp.concatenate([h1, causal_shift(h1, d)], axis=1)
            h2 = jnp.maximum(
                jnp.dot(lhs2.astype(jnp.bfloat16), w2s,
                        preferred_element_type=jnp.float32) + b2, 0.0)

            x = jnp.maximum(h2 + res, 0.0)                      # block output relu

        # Final nn.Linear(hidden, 32), lane-dense padded to out_pad=128.  [R3]
        dec_b = biases[dec_bias_row:dec_bias_row + 1, :out_pad]
        y = jnp.dot(x.astype(jnp.bfloat16), dec_w_ref[...],
                    preferred_element_type=jnp.float32) + dec_b
        o_ref[...] = y.astype(o_ref.dtype)

    return kernel


# ----------------------------------------------------------------------------
# Wrapper
# ----------------------------------------------------------------------------
def text_encoder_tcn_forward(input_ids, params, *, max_rows_per_tile=2048):
    """Mirrors TextEncoderTCN.forward (inference): returns (y, 0)."""
    emb = jnp.take(params["embedding"], input_ids, axis=0)      # (B, T, E) gather glue
    B, T, E = emb.shape
    BT = B * T
    x2d = emb.reshape(BT, E)

    blocks = params["blocks"]
    block_meta = tuple((b["dilation"], b["use_downsample"], b["cin"], b["cout"],
                        b["r_b1"], b["r_bd"], b["r_b2"]) for b in blocks)
    O = params["out_width"]
    O_pad = params["out_width_padded"]
    H = blocks[-1]["cout"]

    # --- batch-aligned M tiling (no halo: causality never crosses a batch) [R2]
    tile_b = max(1, min(B, max_rows_per_tile // T))
    while tile_b > 1 and (B % tile_b != 0 or (tile_b * T) % 8 != 0):
        tile_b -= 1
    if B % tile_b != 0 or ((tile_b * T) % 8 != 0 and tile_b != B):
        tile_b = B                                  # full-extent block is always legal
    num_tiles = B // tile_b
    rows = tile_b * T

    kernel = _make_fused_tcn_kernel(rows, T, block_meta,
                                    params["dec_bias_row"], O_pad)

    weight_inputs = []
    for b in blocks:
        weight_inputs += [b["w1s"], b["w2s"]]
    flat_inputs = [x2d, params["bias_pack"]] + weight_inputs + [params["dec_w_pad"]]

    # [R5] activations blocked (VMEM-pipelined); weights/biases whole-array VMEM
    vmem_whole = pl.BlockSpec(memory_space=pltpu.MemorySpace.VMEM)
    in_specs = ([pl.BlockSpec((rows, E), lambda i: (i, 0))]
                + [vmem_whole] * (len(flat_inputs) - 1))
    out_specs = pl.BlockSpec((rows, O_pad), lambda i: (i, 0))

    # Advisory cost estimate (counts the zero block of the fused-ds RHS — the
    # MXU does that work regardless).
    flops = 0
    for (d, use_ds, cin, cout, _, _, _) in block_meta:
        n1 = 2 * cout if use_ds else cout
        flops += 2 * BT * (2 * cin) * n1            # conv1 (+ fused downsample)
        flops += 2 * BT * (2 * cout) * cout         # conv2
    flops += 2 * BT * H * O_pad                     # decoder
    bytes_accessed = (sum(int(a.size) * a.dtype.itemsize for a in flat_inputs)
                      + BT * O_pad * 4)

    # [R7] VMEM budget from actual per-tile use (weights + activation slabs).
    max_c = max([E] + [b["cout"] for b in blocks])
    weight_bytes = sum(int(a.size) * a.dtype.itemsize for a in flat_inputs[1:])
    working_bytes = rows * (E + O_pad + 16 * max_c) * 4
    vmem_limit = int(min(100 * 2**20, max(8 * 2**20, 2 * (weight_bytes + working_bytes))))

    y_pad = pl.pallas_call(
        kernel,
        grid=(num_tiles,),
        in_specs=in_specs,
        out_specs=out_specs,
        out_shape=jax.ShapeDtypeStruct((BT, O_pad), jnp.float32),
        cost_estimate=pl.CostEstimate(flops=flops, transcendentals=0,
                                      bytes_accessed=bytes_accessed),
        compiler_params=pltpu.CompilerParams(
            dimension_semantics=("parallel",),      # megacore split over row tiles
            vmem_limit_bytes=vmem_limit),
    )(*flat_inputs)

    return y_pad[:, :O].reshape(B, T, O), 0


# ----------------------------------------------------------------------------
# Deterministic synthetic parameter init (shapes from the module __init__)
# ----------------------------------------------------------------------------
def init_params(key, n_words, embed_size, hidden_size, n_layers):
    # lane alignment keeps the in-kernel concats / column splits on the aligned
    # Mosaic path (see correctness note in the review).
    assert embed_size % LANE == 0 and hidden_size % LANE == 0

    def nrm(k, shape, std):
        return std * jax.random.normal(k, shape, dtype=jnp.float32)

    def uni(k, shape, bound):
        return jax.random.uniform(k, shape, jnp.float32, -bound, bound)

    def q(w):  # snap weights to bf16-representable values (kernel & reference share them)
        return w.astype(jnp.bfloat16).astype(jnp.float32)

    params = {"embedding": nrm(jax.random.fold_in(key, 0),
                               (n_words, embed_size), 1.0)}      # nn.Embedding N(0,1)

    O, O_pad = 32, LANE
    bias_width = max(hidden_size, O_pad)
    bias_rows = []

    def pad_row(b):
        return jnp.pad(b, ((0, 0), (0, bias_width - b.shape[1])))

    blocks = []
    for i in range(n_layers):
        cin = embed_size if i == 0 else hidden_size
        cout = hidden_size
        d = 2 ** i
        ks = jax.random.split(jax.random.fold_in(key, 100 + i), 8)
        # effective conv weights (weight_norm folded): N(0, 0.01), (Cout, Cin, 2)
        w1 = q(nrm(ks[0], (cout, cin, 2), 0.01))
        w2 = q(nrm(ks[1], (cout, cout, 2), 0.01))
        b1 = uni(ks[2], (1, cout), 1.0 / (cin * 2) ** 0.5)       # Conv1d default bias
        b2 = uni(ks[3], (1, cout), 1.0 / (cout * 2) ** 0.5)
        # taps transposed to (Cin, Cout): tap 0 -> x[t-d], tap 1 -> x[t]
        w1a, w1b = jnp.transpose(w1[:, :, 0]), jnp.transpose(w1[:, :, 1])
        w2a, w2b = jnp.transpose(w2[:, :, 0]), jnp.transpose(w2[:, :, 1])
        use_ds = cin != cout
        blk = dict(dilation=d, use_downsample=use_ds, cin=cin, cout=cout,
                   w1a=w1a, w1b=w1b, b1=b1, w2a=w2a, w2b=w2b, b2=b2)

        blk["r_b1"] = len(bias_rows); bias_rows.append(pad_row(b1))
        if use_ds:
            wd = q(jnp.transpose(nrm(ks[4], (cout, cin, 1), 0.01)[:, :, 0]))   # (Cin,Cout)
            bd = uni(ks[5], (1, cout), 1.0 / cin ** 0.5)
            blk["wd"], blk["bd"] = wd, bd
            blk["r_bd"] = len(bias_rows); bias_rows.append(pad_row(bd))
            # conv1 (+) 1x1 downsample, fused RHS: [[w1b, wd], [w1a, 0]]
            top = jnp.concatenate([w1b, wd], axis=1)
            bot = jnp.concatenate([w1a, jnp.zeros_like(wd)], axis=1)
            w1s = jnp.concatenate([top, bot], axis=0)            # (2*Cin, 2*Cout)
        else:
            blk["r_bd"] = -1
            w1s = jnp.concatenate([w1b, w1a], axis=0)            # (2*Cin, Cout)
        blk["r_b2"] = len(bias_rows); bias_rows.append(pad_row(b2))
        w2s = jnp.concatenate([w2b, w2a], axis=0)                # (2*Cout, Cout)
        blk["w1s"] = w1s.astype(jnp.bfloat16)                    # [R1] MXU input dtype
        blk["w2s"] = w2s.astype(jnp.bfloat16)
        blocks.append(blk)
    params["blocks"] = blocks

    # decoder Linear(hidden, 32): weight N(0,0.01), bias 0 (per init_weights)
    dec_w = q(nrm(jax.random.fold_in(key, 999), (O, hidden_size), 0.01))
    dec_b = jnp.zeros((1, O), jnp.float32)
    params["dec_w_t"] = jnp.transpose(dec_w)                     # (H, 32) f32, reference
    params["dec_b"] = dec_b
    params["dec_w_pad"] = jnp.pad(jnp.transpose(dec_w),
                                  ((0, 0), (0, O_pad - O))).astype(jnp.bfloat16)  # [R3]
    params["dec_bias_row"] = len(bias_rows)
    bias_rows.append(pad_row(dec_b))
    params["bias_pack"] = jnp.concatenate(bias_rows, axis=0)     # [R4] (n_bias, W) f32
    params["out_width"] = O
    params["out_width_padded"] = O_pad
    return params


# ----------------------------------------------------------------------------
# Pure-JAX reference (same math; bf16 matmul inputs, f32 accumulate/epilogue)
# ----------------------------------------------------------------------------
def reference_forward(input_ids, params):
    emb = jnp.take(params["embedding"], input_ids, axis=0)
    x = emb
    T = x.shape[1]

    def mm(v, w):   # mimic kernel numerics: bf16 MXU inputs, f32 accumulation
        return jnp.einsum("btc,cd->btd", v.astype(jnp.bfloat16),
                          w.astype(jnp.bfloat16),
                          preferred_element_type=jnp.float32)

    for blk in params["blocks"]:
        d = blk["dilation"]

        def shift(v):
            return jnp.pad(v, ((0, 0), (d, 0), (0, 0)))[:, :T, :]

        def conv(v, wa, wb, b):
            return mm(v, wb) + mm(shift(v), wa) + b[None]

        h1 = jnp.maximum(conv(x, blk["w1a"], blk["w1b"], blk["b1"]), 0.0)
        h2 = jnp.maximum(conv(h1, blk["w2a"], blk["w2b"], blk["b2"]), 0.0)
        if blk["use_downsample"]:
            res = mm(x, blk["wd"]) + blk["bd"][None]
        else:
            res = x
        x = jnp.maximum(h2 + res, 0.0)
    y = mm(x, params["dec_w_t"]) + params["dec_b"][None]
    return y, 0


# ----------------------------------------------------------------------------
if __name__ == "__main__":
    key = jax.random.PRNGKey(0)

    # Lane-aligned channel sizes; embed != hidden exercises the fused-downsample
    # branch; decoder out = 32 is fixed by the module.
    n_words, embed_size, hidden_size, n_layers = 50, 256, 128, 2
    params = init_params(key, n_words, embed_size, hidden_size, n_layers)

    # 1) Small demo shape -> single tile (grid of 1).
    B, T = 2, 16
    ids = jax.random.randint(jax.random.fold_in(key, 7), (B, T), 0, n_words)
    y, aux = text_encoder_tcn_forward(ids, params)
    y = jax.block_until_ready(y)
    assert y.shape == (B, T, 32), y.shape
    assert aux == 0
    y_ref, _ = reference_forward(ids, params)
    err = float(jnp.max(jnp.abs(y - y_ref)))
    assert jnp.allclose(y, y_ref, rtol=1e-2, atol=1e-2), err

    # 2) Larger batch -> batch-parallel M-tiled grid (4 tiles of 2 batches),
    #    exercising megacore semantics + pipelining per review item [R2].
    B2, T2 = 8, 16
    ids2 = jax.random.randint(jax.random.fold_in(key, 11), (B2, T2), 0, n_words)
    y2, _ = text_encoder_tcn_forward(ids2, params, max_rows_per_tile=32)
    y2 = jax.block_until_ready(y2)
    assert y2.shape == (B2, T2, 32), y2.shape
    y2_ref, _ = reference_forward(ids2, params)
    err2 = float(jnp.max(jnp.abs(y2 - y2_ref)))
    assert jnp.allclose(y2, y2_ref, rtol=1e-2, atol=1e-2), err2

    print("KERNEL_OK")
</pallas_src>

<mosaic_0001>
module attributes {stable_mosaic.version = 11 : i64} {
  func.func @kernel(%arg0: i32, %arg1: memref<32x256xf32, #tpu.memory_space<vmem>>, %arg2: memref<6x128xf32, #tpu.memory_space<vmem>>, %arg3: memref<512x256xbf16, #tpu.memory_space<vmem>>, %arg4: memref<256x128xbf16, #tpu.memory_space<vmem>>, %arg5: memref<256x128xbf16, #tpu.memory_space<vmem>>, %arg6: memref<256x128xbf16, #tpu.memory_space<vmem>>, %arg7: memref<128x128xbf16, #tpu.memory_space<vmem>>, %arg8: memref<32x128xf32, #tpu.memory_space<vmem>>) attributes {dimension_semantics = [#tpu.dimension_semantics<parallel>], iteration_bounds = array<i64: 1>, scalar_prefetch = 0 : i64, scratch_operands = 0 : i64, tpu.core_type = #tpu.core_type<tc>, window_params = [{transform_indices = @transform_0, window_bounds = array<i64: 32, 256>}, {pipeline_mode = #tpu.pipeline_mode<synchronous>, transform_indices = @transform_1, window_bounds = array<i64: 6, 128>}, {pipeline_mode = #tpu.pipeline_mode<synchronous>, transform_indices = @transform_2, window_bounds = array<i64: 512, 256>}, {pipeline_mode = #tpu.pipeline_mode<synchronous>, transform_indices = @transform_3, window_bounds = array<i64: 256, 128>}, {pipeline_mode = #tpu.pipeline_mode<synchronous>, transform_indices = @transform_4, window_bounds = array<i64: 256, 128>}, {pipeline_mode = #tpu.pipeline_mode<synchronous>, transform_indices = @transform_5, window_bounds = array<i64: 256, 128>}, {pipeline_mode = #tpu.pipeline_mode<synchronous>, transform_indices = @transform_6, window_bounds = array<i64: 128, 128>}, {transform_indices = @transform_7, window_bounds = array<i64: 32, 128>}]} {
    %c0 = arith.constant 0 : index
    %c0_0 = arith.constant 0 : index
    %0 = vector.load %arg2[%c0, %c0_0] : memref<6x128xf32, #tpu.memory_space<vmem>>, vector<6x128xf32>
    %1 = tpu.iota {dimensions = array<i32: 0>} : vector<32x1xi32>
    %c15_i32 = arith.constant 15 : i32
    %2 = vector.broadcast %c15_i32 : i32 to vector<32x1xi32>
    %3 = arith.andi %1, %2 : vector<32x1xi32>
    %c0_1 = arith.constant 0 : index
    %c0_2 = arith.constant 0 : index
    %4 = vector.load %arg1[%c0_1, %c0_2] : memref<32x256xf32, #tpu.memory_space<vmem>>, vector<32x256xf32>
    %c0_3 = arith.constant 0 : index
    %c0_4 = arith.constant 0 : index
    %5 = vector.load %arg3[%c0_3, %c0_4] : memref<512x256xbf16, #tpu.memory_space<vmem>>, vector<512x256xbf16>
    %c0_5 = arith.constant 0 : index
    %c0_6 = arith.constant 0 : index
    %6 = vector.load %arg4[%c0_5, %c0_6] : memref<256x128xbf16, #tpu.memory_space<vmem>>, vector<256x128xbf16>
    %7 = vector.extract_strided_slice %0 {offsets = [0, 0], sizes = [1, 128], strides = [1, 1]} : vector<6x128xf32> to vector<1x128xf32>
    %8 = vector.extract_strided_slice %0 {offsets = [2, 0], sizes = [1, 128], strides = [1, 1]} : vector<6x128xf32> to vector<1x128xf32>
    %c1_i32 = arith.constant 1 : i32
    %9 = tpu.dynamic_rotate %4 by %c1_i32 dim 0 : vector<32x256xf32>, i32 -> vector<32x256xf32>
    %c1_i32_7 = arith.constant 1 : i32
    %10 = vector.broadcast %c1_i32_7 : i32 to vector<32x1xi32>
    %11 = arith.cmpi sge, %3, %10 : vector<32x1xi32>
    %cst = arith.constant 0.000000e+00 : f32
    %12 = vector.shape_cast %11 : vector<32x1xi1> to vector<32x1xi1>
    %13 = vector.broadcast %12 : vector<32x1xi1> to vector<32x256xi1>
    %14 = vector.broadcast %cst : f32 to vector<32x256xf32>
    %15 = arith.select %13, %9, %14 : vector<32x256xi1>, vector<32x256xf32>
    %16 = tpu.concatenate %4, %15 in 1 : vector<32x256xf32>, vector<32x256xf32> -> vector<32x512xf32>
    %17 = arith.truncf %16 : vector<32x512xf32> to vector<32x512xbf16>
    %cst_8 = arith.constant dense<0.000000e+00> : vector<32x256xf32>
    %18 = tpu.matmul %17, %5, %cst_8 {dimension_numbers = #tpu.dot_dimension_numbers<[1], [0], [0], [1], [0, 0, 1, 1], [], []>} : vector<32x512xbf16>, vector<512x256xbf16>, vector<32x256xf32> -> vector<32x256xf32>
    %19 = vector.extract_strided_slice %0 {offsets = [1, 0], sizes = [1, 128], strides = [1, 1]} : vector<6x128xf32> to vector<1x128xf32>
    %20 = vector.extract_strided_slice %18 {offsets = [0, 0], sizes = [32, 128], strides = [1, 1]} : vector<32x256xf32> to vector<32x128xf32>
    %21 = vector.broadcast %7 : vector<1x128xf32> to vector<32x128xf32>
    %22 = arith.addf %20, %21 : vector<32x128xf32>
    %cst_9 = arith.constant 0.000000e+00 : f32
    %23 = vector.broadcast %cst_9 : f32 to vector<32x128xf32>
    %24 = arith.maximumf %22, %23 : vector<32x128xf32>
    %25 = vector.extract_strided_slice %18 {offsets = [0, 128], sizes = [32, 128], strides = [1, 1]} : vector<32x256xf32> to vector<32x128xf32>
    %26 = vector.broadcast %19 : vector<1x128xf32> to vector<32x128xf32>
    %27 = arith.addf %25, %26 : vector<32x128xf32>
    %c1_i32_10 = arith.constant 1 : i32
    %28 = tpu.dynamic_rotate %24 by %c1_i32_10 dim 0 : vector<32x128xf32>, i32 -> vector<32x128xf32>
    %c1_i32_11 = arith.constant 1 : i32
    %29 = vector.broadcast %c1_i32_11 : i32 to vector<32x1xi32>
    %30 = arith.cmpi sge, %3, %29 : vector<32x1xi32>
    %cst_12 = arith.constant 0.000000e+00 : f32
    %31 = vector.shape_cast %30 : vector<32x1xi1> to vector<32x1xi1>
    %32 = vector.broadcast %31 : vector<32x1xi1> to vector<32x128xi1>
    %33 = vector.broadcast %cst_12 : f32 to vector<32x128xf32>
    %34 = arith.select %32, %28, %33 : vector<32x128xi1>, vector<32x128xf32>
    %35 = tpu.concatenate %24, %34 in 1 : vector<32x128xf32>, vector<32x128xf32> -> vector<32x256xf32>
    %36 = arith.truncf %35 : vector<32x256xf32> to vector<32x256xbf16>
    %cst_13 = arith.constant dense<0.000000e+00> : vector<32x128xf32>
    %37 = tpu.matmul %36, %6, %cst_13 {dimension_numbers = #tpu.dot_dimension_numbers<[1], [0], [0], [1], [0, 0, 1, 1], [], []>} : vector<32x256xbf16>, vector<256x128xbf16>, vector<32x128xf32> -> vector<32x128xf32>
    %38 = vector.broadcast %8 : vector<1x128xf32> to vector<32x128xf32>
    %39 = arith.addf %37, %38 : vector<32x128xf32>
    %cst_14 = arith.constant 0.000000e+00 : f32
    %40 = vector.broadcast %cst_14 : f32 to vector<32x128xf32>
    %41 = arith.maximumf %39, %40 : vector<32x128xf32>
    %42 = arith.addf %41, %27 : vector<32x128xf32>
    %cst_15 = arith.constant 0.000000e+00 : f32
    %43 = vector.broadcast %cst_15 : f32 to vector<32x128xf32>
    %44 = arith.maximumf %42, %43 : vector<32x128xf32>
    %c0_16 = arith.constant 0 : index
    %c0_17 = arith.constant 0 : index
    %45 = vector.load %arg5[%c0_16, %c0_17] : memref<256x128xbf16, #tpu.memory_space<vmem>>, vector<256x128xbf16>
    %c0_18 = arith.constant 0 : index
    %c0_19 = arith.constant 0 : index
    %46 = vector.load %arg6[%c0_18, %c0_19] : memref<256x128xbf16, #tpu.memory_space<vmem>>, vector<256x128xbf16>
    %47 = vector.extract_strided_slice %0 {offsets = [3, 0], sizes = [1, 128], strides = [1, 1]} : vector<6x128xf32> to vector<1x128xf32>
    %48 = vector.extract_strided_slice %0 {offsets = [4, 0], sizes = [1, 128], strides = [1, 1]} : vector<6x128xf32> to vector<1x128xf32>
    %c2_i32 = arith.constant 2 : i32
    %49 = tpu.dynamic_rotate %44 by %c2_i32 dim 0 : vector<32x128xf32>, i32 -> vector<32x128xf32>
    %c2_i32_20 = arith.constant 2 : i32
    %50 = vector.broadcast %c2_i32_20 : i32 to vector<32x1xi32>
    %51 = arith.cmpi sge, %3, %50 : vector<32x1xi32>
    %cst_21 = arith.constant 0.000000e+00 : f32
    %52 = vector.shape_cast %51 : vector<32x1xi1> to vector<32x1xi1>
    %53 = vector.broadcast %52 : vector<32x1xi1> to vector<32x128xi1>
    %54 = vector.broadcast %cst_21 : f32 to vector<32x128xf32>
    %55 = arith.select %53, %49, %54 : vector<32x128xi1>, vector<32x128xf32>
    %56 = tpu.concatenate %44, %55 in 1 : vector<32x128xf32>, vector<32x128xf32> -> vector<32x256xf32>
    %57 = arith.truncf %56 : vector<32x256xf32> to vector<32x256xbf16>
    %cst_22 = arith.constant dense<0.000000e+00> : vector<32x128xf32>
    %58 = tpu.matmul %57, %45, %cst_22 {dimension_numbers = #tpu.dot_dimension_numbers<[1], [0], [0], [1], [0, 0, 1, 1], [], []>} : vector<32x256xbf16>, vector<256x128xbf16>, vector<32x128xf32> -> vector<32x128xf32>
    %59 = vector.broadcast %47 : vector<1x128xf32> to vector<32x128xf32>
    %60 = arith.addf %58, %59 : vector<32x128xf32>
    %cst_23 = arith.constant 0.000000e+00 : f32
    %61 = vector.broadcast %cst_23 : f32 to vector<32x128xf32>
    %62 = arith.maximumf %60, %61 : vector<32x128xf32>
    %c2_i32_24 = arith.constant 2 : i32
    %63 = tpu.dynamic_rotate %62 by %c2_i32_24 dim 0 : vector<32x128xf32>, i32 -> vector<32x128xf32>
    %c2_i32_25 = arith.constant 2 : i32
    %64 = vector.broadcast %c2_i32_25 : i32 to vector<32x1xi32>
    %65 = arith.cmpi sge, %3, %64 : vector<32x1xi32>
    %cst_26 = arith.constant 0.000000e+00 : f32
    %66 = vector.shape_cast %65 : vector<32x1xi1> to vector<32x1xi1>
    %67 = vector.broadcast %66 : vector<32x1xi1> to vector<32x128xi1>
    %68 = vector.broadcast %cst_26 : f32 to vector<32x128xf32>
    %69 = arith.select %67, %63, %68 : vector<32x128xi1>, vector<32x128xf32>
    %70 = tpu.concatenate %62, %69 in 1 : vector<32x128xf32>, vector<32x128xf32> -> vector<32x256xf32>
    %71 = arith.truncf %70 : vector<32x256xf32> to vector<32x256xbf16>
    %cst_27 = arith.constant dense<0.000000e+00> : vector<32x128xf32>
    %72 = tpu.matmul %71, %46, %cst_27 {dimension_numbers = #tpu.dot_dimension_numbers<[1], [0], [0], [1], [0, 0, 1, 1], [], []>} : vector<32x256xbf16>, vector<256x128xbf16>, vector<32x128xf32> -> vector<32x128xf32>
    %73 = vector.broadcast %48 : vector<1x128xf32> to vector<32x128xf32>
    %74 = arith.addf %72, %73 : vector<32x128xf32>
    %cst_28 = arith.constant 0.000000e+00 : f32
    %75 = vector.broadcast %cst_28 : f32 to vector<32x128xf32>
    %76 = arith.maximumf %74, %75 : vector<32x128xf32>
    %77 = arith.addf %76, %44 : vector<32x128xf32>
    %cst_29 = arith.constant 0.000000e+00 : f32
    %78 = vector.broadcast %cst_29 : f32 to vector<32x128xf32>
    %79 = arith.maximumf %77, %78 : vector<32x128xf32>
    %80 = vector.extract_strided_slice %0 {offsets = [5, 0], sizes = [1, 128], strides = [1, 1]} : vector<6x128xf32> to vector<1x128xf32>
    %81 = arith.truncf %79 : vector<32x128xf32> to vector<32x128xbf16>
    %c0_30 = arith.constant 0 : index
    %c0_31 = arith.constant 0 : index
    %82 = vector.load %arg7[%c0_30, %c0_31] : memref<128x128xbf16, #tpu.memory_space<vmem>>, vector<128x128xbf16>
    %cst_32 = arith.constant dense<0.000000e+00> : vector<32x128xf32>
    %83 = tpu.matmul %81, %82, %cst_32 {dimension_numbers = #tpu.dot_dimension_numbers<[1], [0], [0], [1], [0, 0, 1, 1], [], []>} : vector<32x128xbf16>, vector<128x128xbf16>, vector<32x128xf32> -> vector<32x128xf32>
    %84 = vector.broadcast %80 : vector<1x128xf32> to vector<32x128xf32>
    %85 = arith.addf %83, %84 : vector<32x128xf32>
    %c0_33 = arith.constant 0 : index
    %c0_34 = arith.constant 0 : index
    %86 = vector.load %arg8[%c0_33, %c0_34] : memref<32x128xf32, #tpu.memory_space<vmem>>, vector<32x128xf32>
    tpu.vector_store %arg8[%c0_33, %c0_34], %85 {strides = array<i32>} : memref<32x128xf32, #tpu.memory_space<vmem>>, vector<32x128xf32>,
    return
  }
  func.func @transform_0(%arg0: i32) -> (i32, i32) {
    %c0_i32 = arith.constant 0 : i32
    %c0_i32_0 = arith.constant 0 : i32
    return %arg0, %c0_i32 : i32, i32
  }
  func.func @transform_1(%arg0: i32) -> (i32, i32) {
    %c0_i32 = arith.constant 0 : i32
    %c0_i32_0 = arith.constant 0 : i32
    %c0_i32_1 = arith.constant 0 : i32
    return %c0_i32, %c0_i32_0 : i32, i32
  }
  func.func @transform_2(%arg0: i32) -> (i32, i32) {
    %c0_i32 = arith.constant 0 : i32
    %c0_i32_0 = arith.constant 0 : i32
    %c0_i32_1 = arith.constant 0 : i32
    return %c0_i32, %c0_i32_0 : i32, i32
  }
  func.func @transform_3(%arg0: i32) -> (i32, i32) {
    %c0_i32 = arith.constant 0 : i32
    %c0_i32_0 = arith.constant 0 : i32
    %c0_i32_1 = arith.constant 0 : i32
    return %c0_i32, %c0_i32_0 : i32, i32
  }
  func.func @transform_4(%arg0: i32) -> (i32, i32) {
    %c0_i32 = arith.constant 0 : i32
    %c0_i32_0 = arith.constant 0 : i32
    %c0_i32_1 = arith.constant 0 : i32
    return %c0_i32, %c0_i32_0 : i32, i32
  }
  func.func @transform_5(%arg0: i32) -> (i32, i32) {
    %c0_i32 = arith.constant 0 : i32
    %c0_i32_0 = arith.constant 0 : i32
    %c0_i32_1 = arith.constant 0 : i32
    return %c0_i32, %c0_i32_0 : i32, i32
  }
  func.func @transform_6(%arg0: i32) -> (i32, i32) {
    %c0_i32 = arith.constant 0 : i32
    %c0_i32_0 = arith.constant 0 : i32
    %c0_i32_1 = arith.constant 0 : i32
    return %c0_i32, %c0_i32_0 : i32, i32
  }
  func.func @transform_7(%arg0: i32) -> (i32, i32) {
    %c0_i32 = arith.constant 0 : i32
    %c0_i32_0 = arith.constant 0 : i32
    return %arg0, %c0_i32 : i32, i32
  }
}

</mosaic_0001>

<llo_original>
// kernel: tpu_custom_call.1
$region0: #{tpu_custom_call.1}
  #allocation0 [shape = 'u32[]', space=smem, size = 0x4, offset = 0x4, fixed_abs, tag = 'smem constant byte address 0x4 - core index']
  #allocation1 [shape = 'u32[144,128]{1,0:T(1,128)}', space=vmem, size = 0x12000, scoped, tag = 'internal scratch']
  %s0 = inlined_call_operand.hbm [shape: f32[32,256], index: 0, kind: input, shape index: {}]
  %s1 = inlined_call_operand.hbm [shape: f32[6,128], index: 1, kind: input, shape index: {}]
  %s2 = inlined_call_operand.hbm [shape: bf16[512,256], index: 2, kind: input, shape index: {}]
  %s3 = inlined_call_operand.hbm [shape: bf16[256,128], index: 3, kind: input, shape index: {}]
  %s4 = inlined_call_operand.hbm [shape: bf16[256,128], index: 4, kind: input, shape index: {}]
  %s5 = inlined_call_operand.hbm [shape: bf16[256,128], index: 5, kind: input, shape index: {}]
  %s6 = inlined_call_operand.hbm [shape: bf16[128,128], index: 6, kind: input, shape index: {}]
  %s7 = inlined_call_operand.hbm [shape: f32[32,128], index: 7, kind: output, shape index: {}]
  %s8 = sld [smem:[#allocation0]]
  $region66: #{tpu_custom_call.1} parent=0
    _
  %s10 = ssub.s32 1, %s8
  %s11 = scalar_select 0, %s10, %s8
  $region1: #{tpu_custom_call.1} parent=0
    #allocation2 [shape = 'u8[32768]{0}', space=vmem, size = 0x8000, scoped, tag = 'input window, operand 0, single buffered']
    #allocation3 [shape = 's32[1]{0}', space=sflag, size = 0x4, scoped, tag = 'scoped memory for tpu_custom_call.1']
    #allocation4 [shape = 's32[1]{0}', space=sflag, size = 0x4, scoped, tag = 'scoped memory for tpu_custom_call.1']
    #allocation5 [shape = 'u8[4096]{0}', space=vmem, size = 0x1000, scoped, tag = 'input window, operand 1, single buffered']
    #allocation6 [shape = 's32[1]{0}', space=sflag, size = 0x4, scoped, tag = 'scoped memory for tpu_custom_call.1']
    #allocation7 [shape = 'u8[262144]{0}', space=vmem, size = 0x40000, scoped, tag = 'input window, operand 2, single buffered']
    #allocation8 [shape = 'u8[65536]{0}', space=vmem, size = 0x10000, scoped, tag = 'input window, operand 3, single buffered']
    #allocation9 [shape = 's32[1]{0}', space=sflag, size = 0x4, scoped, tag = 'scoped memory for tpu_custom_call.1']
    #allocation10 [shape = 'u8[65536]{0}', space=vmem, size = 0x10000, scoped, tag = 'input window, operand 4, single buffered']
    #allocation11 [shape = 'u8[65536]{0}', space=vmem, size = 0x10000, scoped, tag = 'input window, operand 5, single buffered']
    #allocation12 [shape = 's32[1]{0}', space=sflag, size = 0x4, scoped, tag = 'scoped memory for tpu_custom_call.1']
    #allocation13 [shape = 'u8[32768]{0}', space=vmem, size = 0x8000, scoped, tag = 'input window, operand 6, single buffered']
    #allocation14 [shape = 'u8[16384]{0}', space=vmem, size = 0x4000, scoped, tag = 'output window, operand 0, single buffered']
    %12 = vsyncpa [#allocation3], 0
    %13 = vsyncpa [#allocation6], 0
    %14 = vsyncpa [#allocation9], 0
    %15 = vsyncpa [#allocation12], 0
    %16 = vsyncpa [#allocation4], 0
    // Predicated region
    $region2: #{tpu_custom_call.1} parent=1 // pred_check
      _
    $region3: #{tpu_custom_call.1} parent=1 // pred_check_branch
      %18 = sbr.rel (0) target = $region5
    $region4: #{tpu_custom_call.1} parent=1 // pred_region
      %s20 = ssub.s32 1024, 1024
      %21 = vsyncadd [#allocation3], %s20
      %s22 = sshll.u32 [#allocation2], 4
      %s23 = int_to_ptr.vmem [resolvable:$true] %s22
      %28 = dma.hbm_to_vmem [thread:$0]  %s0, 1024, %s23, [#allocation3], 256, 256, 16
    $region5: #{tpu_custom_call.1} parent=1 // pred_fallthru
      _
    // Predicated region
    $region6: #{tpu_custom_call.1} parent=1 // pred_check
      _
    $region7: #{tpu_custom_call.1} parent=1 // pred_check_branch
      %30 = sbr.rel (0) target = $region9
    $region8: #{tpu_custom_call.1} parent=1 // pred_region
      %s32 = ssub.s32 128, 128
      %33 = vsyncadd [#allocation6], %s32
      %s35 = sshll.u32 [#allocation5], 4
      %s36 = int_to_ptr.vmem [resolvable:$true] %s35
      %38 = dma.hbm_to_vmem [thread:$0]  %s1, 128, %s36, [#allocation6]
    $region9: #{tpu_custom_call.1} parent=1 // pred_fallthru
      _
    // Predicated region
    $region10: #{tpu_custom_call.1} parent=1 // pred_check
      _
    $region11: #{tpu_custom_call.1} parent=1 // pred_check_branch
      %40 = sbr.rel (0) target = $region13
    $region12: #{tpu_custom_call.1} parent=1 // pred_region
      %s42 = ssub.s32 8192, 8192
      %43 = vsyncadd [#allocation6], %s42
      %s44 = sshll.u32 [#allocation7], 4
      %s45 = int_to_ptr.vmem [resolvable:$true] %s44
      %50 = dma.hbm_to_vmem [thread:$0]  %s2, 8192, %s45, [#allocation6], 128, 128, 8
    $region13: #{tpu_custom_call.1} parent=1 // pred_fallthru
      _
    // Predicated region
    $region14: #{tpu_custom_call.1} parent=1 // pred_check
      _
    $region15: #{tpu_custom_call.1} parent=1 // pred_check_branch
      %52 = sbr.rel (0) target = $region17
    $region16: #{tpu_custom_call.1} parent=1 // pred_region
      %s54 = ssub.s32 2048, 2048
      %55 = vsyncadd [#allocation9], %s54
      %s56 = sshll.u32 [#allocation8], 4
      %s57 = int_to_ptr.vmem [resolvable:$true] %s56
      %62 = dma.hbm_to_vmem [thread:$0]  %s3, 2048, %s57, [#allocation9], 64, 64, 4
    $region17: #{tpu_custom_call.1} parent=1 // pred_fallthru
      _
    // Predicated region
    $region18: #{tpu_custom_call.1} parent=1 // pred_check
      _
    $region19: #{tpu_custom_call.1} parent=1 // pred_check_branch
      %64 = sbr.rel (0) target = $region21
    $region20: #{tpu_custom_call.1} parent=1 // pred_region
      %s66 = ssub.s32 2048, 2048
      %67 = vsyncadd [#allocation9], %s66
      %s68 = sshll.u32 [#allocation10], 4
      %s69 = int_to_ptr.vmem [resolvable:$true] %s68
      %74 = dma.hbm_to_vmem [thread:$0]  %s4, 2048, %s69, [#allocation9], 64, 64, 4
    $region21: #{tpu_custom_call.1} parent=1 // pred_fallthru
      _
    // Predicated region
    $region22: #{tpu_custom_call.1} parent=1 // pred_check
      _
    $region23: #{tpu_custom_call.1} parent=1 // pred_check_branch
      %76 = sbr.rel (0) target = $region25
    $region24: #{tpu_custom_call.1} parent=1 // pred_region
      %s78 = ssub.s32 2048, 2048
      %79 = vsyncadd [#allocation12], %s78
      %s80 = sshll.u32 [#allocation11], 4
      %s81 = int_to_ptr.vmem [resolvable:$true] %s80
      %86 = dma.hbm_to_vmem [thread:$0]  %s5, 2048, %s81, [#allocation12], 64, 64, 4
    $region25: #{tpu_custom_call.1} parent=1 // pred_fallthru
      _
    // Predicated region
    $region26: #{tpu_custom_call.1} parent=1 // pred_check
      _
    $region27: #{tpu_custom_call.1} parent=1 // pred_check_branch
      %88 = sbr.rel (0) target = $region29
    $region28: #{tpu_custom_call.1} parent=1 // pred_region
      %s90 = ssub.s32 1024, 1024
      %91 = vsyncadd [#allocation12], %s90
      %s92 = sshll.u32 [#allocation13], 4
      %s93 = int_to_ptr.vmem [resolvable:$true] %s92
      %98 = dma.hbm_to_vmem [thread:$0]  %s6, 1024, %s93, [#allocation12], 64, 64, 4
    $region29: #{tpu_custom_call.1} parent=1 // pred_fallthru
      _
    // Predicated region
    $region30: #{tpu_custom_call.1} parent=1 // pred_check
      _
    $region31: #{tpu_custom_call.1} parent=1 // pred_check_branch
      %100 = sbr.rel (0) target = $region33
    $region32: #{tpu_custom_call.1} parent=1 // pred_region
      %101 = dma.done [#allocation3], 1024
    $region33: #{tpu_custom_call.1} parent=1 // pred_fallthru
      _
    // Predicated region
    $region34: #{tpu_custom_call.1} parent=1 // pred_check
      _
    $region35: #{tpu_custom_call.1} parent=1 // pred_check_branch
      %103 = sbr.rel (0) target = $region37
    $region36: #{tpu_custom_call.1} parent=1 // pred_region
      %104 = dma.done [#allocation6], 128
    $region37: #{tpu_custom_call.1} parent=1 // pred_fallthru
      _
    // Predicated region
    $region38: #{tpu_custom_call.1} parent=1 // pred_check
      _
    $region39: #{tpu_custom_call.1} parent=1 // pred_check_branch
      %106 = sbr.rel (0) target = $region41
    $region40: #{tpu_custom_call.1} parent=1 // pred_region
      %107 = dma.done [#allocation6], 8192
    $region41: #{tpu_custom_call.1} parent=1 // pred_fallthru
      _
    // Predicated region
    $region42: #{tpu_custom_call.1} parent=1 // pred_check
      _
    $region43: #{tpu_custom_call.1} parent=1 // pred_check_branch
      %109 = sbr.rel (0) target = $region45
    $region44: #{tpu_custom_call.1} parent=1 // pred_region
      %110 = dma.done [#allocation9], 2048
    $region45: #{tpu_custom_call.1} parent=1 // pred_fallthru
      _
    // Predicated region
    $region46: #{tpu_custom_call.1} parent=1 // pred_check
      _
    $region47: #{tpu_custom_call.1} parent=1 // pred_check_branch
      %112 = sbr.rel (0) target = $region49
    $region48: #{tpu_custom_call.1} parent=1 // pred_region
      %113 = dma.done [#allocation9], 2048
    $region49: #{tpu_custom_call.1} parent=1 // pred_fallthru
      _
    // Predicated region
    $region50: #{tpu_custom_call.1} parent=1 // pred_check
      _
    $region51: #{tpu_custom_call.1} parent=1 // pred_check_branch
      %115 = sbr.rel (0) target = $region53
    $region52: #{tpu_custom_call.1} parent=1 // pred_region
      %116 = dma.done [#allocation12], 2048
    $region53: #{tpu_custom_call.1} parent=1 // pred_fallthru
      _
    // Predicated region
    $region54: #{tpu_custom_call.1} parent=1 // pred_check
      _
    $region55: #{tpu_custom_call.1} parent=1 // pred_check_branch
      %118 = sbr.rel (0) target = $region57
    $region56: #{tpu_custom_call.1} parent=1 // pred_region
      %119 = dma.done [#allocation12], 1024
    $region57: #{tpu_custom_call.1} parent=1 // pred_fallthru
      _
    %v121 = vld [vmem:[#allocation5] sm:$0x3f]
    %v122 = vlaneseq
    %v123 = vshrl.u32 %v122, 7
    %v124 = vadd.s32 %v123, 8
    %v125 = vadd.s32 %v123, 16
    %v126 = vadd.s32 %v123, 24
    %v127 = vand.u32 %v123, 15
    %v128 = vand.u32 %v124, 15
    %v129 = vand.u32 %v125, 15
    %v130 = vand.u32 %v126, 15
    %v131 = vld [vmem:[#allocation2] sm:$0xff]
    %v132 = vld [vmem:[#allocation2 + $0x8] sm:$0xff]
    %v133 = vld [vmem:[#allocation2 + $0x10] sm:$0xff]
    %v134 = vld [vmem:[#allocation2 + $0x18] sm:$0xff]
    %v135 = vld [vmem:[#allocation2 + $0x20] sm:$0xff]
    %v136 = vld [vmem:[#allocation2 + $0x28] sm:$0xff]
    %v137 = vld [vmem:[#allocation2 + $0x30] sm:$0xff]
    %v138 = vld [vmem:[#allocation2 + $0x38] sm:$0xff]
    %v139 = vld [vmem:[#allocation7] sm:$0xff]
    %v140 = vld [vmem:[#allocation7 + $0x8] sm:$0xff]
    %v141 = vld [vmem:[#allocation7 + $0x10] sm:$0xff]
    %v142 = vld [vmem:[#allocation7 + $0x18] sm:$0xff]
    %v143 = vld [vmem:[#allocation7 + $0x20] sm:$0xff]
    %v144 = vld [vmem:[#allocation7 + $0x28] sm:$0xff]
    %v145 = vld [vmem:[#allocation7 + $0x30] sm:$0xff]
    %v146 = vld [vmem:[#allocation7 + $0x38] sm:$0xff]
    %v147 = vld [vmem:[#allocation7 + $0x40] sm:$0xff]
    %v148 = vld [vmem:[#allocation7 + $0x48] sm:$0xff]
    %v149 = vld [vmem:[#allocation7 + $0x50] sm:$0xff]
    %v150 = vld [vmem:[#allocation7 + $0x58] sm:$0xff]
    %v151 = vld [vmem:[#allocation7 + $0x60] sm:$0xff]
    %v152 = vld [vmem:[#allocation7 + $0x68] sm:$0xff]
    %v153 = vld [vmem:[#allocation7 + $0x70] sm:$0xff]
    %v154 = vld [vmem:[#allocation7 + $0x78] sm:$0xff]
    %v155 = vld [vmem:[#allocation7 + $0x80] sm:$0xff]
    %v156 = vld [vmem:[#allocation7 + $0x88] sm:$0xff]
    %v157 = vld [vmem:[#allocation7 + $0x90] sm:$0xff]
    %v158 = vld [vmem:[#allocation7 + $0x98] sm:$0xff]
    %v159 = vld [vmem:[#allocation7 + $0xa0] sm:$0xff]
    %v160 = vld [vmem:[#allocation7 + $0xa8] sm:$0xff]
    %v161 = vld [vmem:[#allocation7 + $0xb0] sm:$0xff]
    %v162 = vld [vmem:[#allocation7 + $0xb8] sm:$0xff]
    %v163 = vld [vmem:[#allocation7 + $0xc0] sm:$0xff]
    %v164 = vld [vmem:[#allocation7 + $0xc8] sm:$0xff]
    %v165 = vld [vmem:[#allocation7 + $0xd0] sm:$0xff]
    %v166 = vld [vmem:[#allocation7 + $0xd8] sm:$0xff]
    %v167 = vld [vmem:[#allocation7 + $0xe0] sm:$0xff]
    %v168 = vld [vmem:[#allocation7 + $0xe8] sm:$0xff]
    %v169 = vld [vmem:[#allocation7 + $0xf0] sm:$0xff]
    %v170 = vld [vmem:[#allocation7 + $0xf8] sm:$0xff]
    %v171 = vld [vmem:[#allocation7 + $0x100] sm:$0xff]
    %v172 = vld [vmem:[#allocation7 + $0x108] sm:$0xff]
    %v173 = vld [vmem:[#allocation7 + $0x110] sm:$0xff]
    %v174 = vld [vmem:[#allocation7 + $0x118] sm:$0xff]
    %v175 = vld [vmem:[#allocation7 + $0x120] sm:$0xff]
    %v176 = vld [vmem:[#allocation7 + $0x128] sm:$0xff]
    %v177 = vld [vmem:[#allocation7 + $0x130] sm:$0xff]
    %v178 = vld [vmem:[#allocation7 + $0x138] sm:$0xff]
    %v179 = vld [vmem:[#allocation7 + $0x140] sm:$0xff]
    %v180 = vld [vmem:[#allocation7 + $0x148] sm:$0xff]
    %v181 = vld [vmem:[#allocation7 + $0x150] sm:$0xff]
    %v182 = vld [vmem:[#allocation7 + $0x158] sm:$0xff]
    %v183 = vld [vmem:[#allocation7 + $0x160] sm:$0xff]
    %v184 = vld [vmem:[#allocation7 + $0x168] sm:$0xff]
    %v185 = vld [vmem:[#allocation7 + $0x170] sm:$0xff]
    %v186 = vld [vmem:[#allocation7 + $0x178] sm:$0xff]
    %v187 = vld [vmem:[#allocation7 + $0x180] sm:$0xff]
    %v188 = vld [vmem:[#allocation7 + $0x188] sm:$0xff]
    %v189 = vld [vmem:[#allocation7 + $0x190] sm:$0xff]
    %v190 = vld [vmem:[#allocation7 + $0x198] sm:$0xff]
    %v191 = vld [vmem:[#allocation7 + $0x1a0] sm:$0xff]
    %v192 = vld [vmem:[#allocation7 + $0x1a8] sm:$0xff]
    %v193 = vld [vmem:[#allocation7 + $0x1b0] sm:$0xff]
    %v194 = vld [vmem:[#allocation7 + $0x1b8] sm:$0xff]
    %v195 = vld [vmem:[#allocation7 + $0x1c0] sm:$0xff]
    %v196 = vld [vmem:[#allocation7 + $0x1c8] sm:$0xff]
    %v197 = vld [vmem:[#allocation7 + $0x1d0] sm:$0xff]
    %v198 = vld [vmem:[#allocation7 + $0x1d8] sm:$0xff]
    %v199 = vld [vmem:[#allocation7 + $0x1e0] sm:$0xff]
    %v200 = vld [vmem:[#allocation7 + $0x1e8] sm:$0xff]
    %v201 = vld [vmem:[#allocation7 + $0x1f0] sm:$0xff]
    %v202 = vld [vmem:[#allocation7 + $0x1f8] sm:$0xff]
    %v203 = vld [vmem:[#allocation8] sm:$0xf]
    %v204 = vld [vmem:[#allocation8 + $0x4] sm:$0xf]
    %v205 = vld [vmem:[#allocation8 + $0x8] sm:$0xf]
    %v206 = vld [vmem:[#allocation8 + $0xc] sm:$0xf]
    %v207 = vld [vmem:[#allocation8 + $0x10] sm:$0xf]
    %v208 = vld [vmem:[#allocation8 + $0x14] sm:$0xf]
    %v209 = vld [vmem:[#allocation8 + $0x18] sm:$0xf]
    %v210 = vld [vmem:[#allocation8 + $0x1c] sm:$0xf]
    %v211 = vld [vmem:[#allocation8 + $0x20] sm:$0xf]
    %v212 = vld [vmem:[#allocation8 + $0x24] sm:$0xf]
    %v213 = vld [vmem:[#allocation8 + $0x28] sm:$0xf]
    %v214 = vld [vmem:[#allocation8 + $0x2c] sm:$0xf]
    %v215 = vld [vmem:[#allocation8 + $0x30] sm:$0xf]
    %v216 = vld [vmem:[#allocation8 + $0x34] sm:$0xf]
    %v217 = vld [vmem:[#allocation8 + $0x38] sm:$0xf]
    %v218 = vld [vmem:[#allocation8 + $0x3c] sm:$0xf]
    %v219 = vld [vmem:[#allocation8 + $0x40] sm:$0xf]
    %v220 = vld [vmem:[#allocation8 + $0x44] sm:$0xf]
    %v221 = vld [vmem:[#allocation8 + $0x48] sm:$0xf]
    %v222 = vld [vmem:[#allocation8 + $0x4c] sm:$0xf]
    %v223 = vld [vmem:[#allocation8 + $0x50] sm:$0xf]
    %v224 = vld [vmem:[#allocation8 + $0x54] sm:$0xf]
    %v225 = vld [vmem:[#allocation8 + $0x58] sm:$0xf]
    %v226 = vld [vmem:[#allocation8 + $0x5c] sm:$0xf]
    %v227 = vld [vmem:[#allocation8 + $0x60] sm:$0xf]
    %v228 = vld [vmem:[#allocation8 + $0x64] sm:$0xf]
    %v229 = vld [vmem:[#allocation8 + $0x68] sm:$0xf]
    %v230 = vld [vmem:[#allocation8 + $0x6c] sm:$0xf]
    %v231 = vld [vmem:[#allocation8 + $0x70] sm:$0xf]
    %v232 = vld [vmem:[#allocation8 + $0x74] sm:$0xf]
    %v233 = vld [vmem:[#allocation8 + $0x78] sm:$0xf]
    %v234 = vld [vmem:[#allocation8 + $0x7c] sm:$0xf]
    %v235 = vrot.slane %v131, 7
    %v236 = vrot.slane %v132, 7
    %v237 = vrot.slane %v133, 7
    %v238 = vrot.slane %v134, 7
    %v239 = vrot.slane %v135, 7
    %v240 = vrot.slane %v136, 7
    %v241 = vrot.slane %v137, 7
    %v242 = vrot.slane %v138, 7
    %vm243 = vcmp.lt.s32.totalorder %v123, 1
    %v244 = vsel %vm243, %v239, %v241
    %v245 = vsel %vm243, %v240, %v242
    %v246 = vsel %vm243, %v237, %v239
    %v247 = vsel %vm243, %v238, %v240
    %v248 = vsel %vm243, %v235, %v237
    %v249 = vsel %vm243, %v236, %v238
    %v250 = vsel %vm243, %v241, %v235
    %v251 = vsel %vm243, %v242, %v236
    %vm252 = vcmp.ge.s32.totalorder %v127, 1
    %vm253 = vcmp.ge.s32.totalorder %v128, 1
    %vm254 = vcmp.ge.s32.totalorder %v129, 1
    %vm255 = vcmp.ge.s32.totalorder %v130, 1
    %v256 = vsel %vm252, 1, 0
    %v257 = vsel %vm253, 1, 0
    %v258 = vsel %vm254, 1, 0
    %v259 = vsel %vm255, 1, 0
    %vm260 = vcmp.eq.s32.totalorder %v256, 1
    %vm261 = vcmp.eq.s32.totalorder %v257, 1
    %vm262 = vcmp.eq.s32.totalorder %v258, 1
    %vm263 = vcmp.eq.s32.totalorder %v259, 1
    %v264 = vsel %vm260, %v250, 0.0
    %v265 = vsel %vm260, %v251, 0.0
    %v266 = vsel %vm261, %v248, 0.0
    %v267 = vsel %vm261, %v249, 0.0
    %v268 = vsel %vm262, %v246, 0.0
    %v269 = vsel %vm262, %v247, 0.0
    %v270 = vsel %vm263, %v244, 0.0
    %v271 = vsel %vm263, %v245, 0.0
    %v272 = vpack.c.bf16 %v133, %v131
    %v273 = vpack.c.bf16 %v134, %v132
    %v274 = vpack.c.bf16 %v266, %v264
    %v275 = vpack.c.bf16 %v267, %v265
    %v276 = vpack.c.bf16 %v137, %v135
    %v277 = vpack.c.bf16 %v138, %v136
    %v278 = vpack.c.bf16 %v270, %v268
    %v279 = vpack.c.bf16 %v271, %v269
    %v344 = vunpack.c.l.b16 %v139
    %v345 = vunpack.c.h.b16 %v139
    %v346 = vunpack.c.l.b16 %v140
    %v347 = vunpack.c.h.b16 %v140
    %v348 = vunpack.c.l.b16 %v141
    %v349 = vunpack.c.h.b16 %v141
    %v350 = vunpack.c.l.b16 %v142
    %v351 = vunpack.c.h.b16 %v142
    %v352 = vunpack.c.l.b16 %v143
    %v353 = vunpack.c.h.b16 %v143
    %v354 = vunpack.c.l.b16 %v144
    %v355 = vunpack.c.h.b16 %v144
    %v356 = vunpack.c.l.b16 %v145
    %v357 = vunpack.c.h.b16 %v145
    %v358 = vunpack.c.l.b16 %v146
    %v359 = vunpack.c.h.b16 %v146
    %v360 = vunpack.c.l.b16 %v147
    %v361 = vunpack.c.h.b16 %v147
    %v362 = vunpack.c.l.b16 %v148
    %v363 = vunpack.c.h.b16 %v148
    %v364 = vunpack.c.l.b16 %v149
    %v365 = vunpack.c.h.b16 %v149
    %v366 = vunpack.c.l.b16 %v150
    %v367 = vunpack.c.h.b16 %v150
    %v368 = vunpack.c.l.b16 %v151
    %v369 = vunpack.c.h.b16 %v151
    %v370 = vunpack.c.l.b16 %v152
    %v371 = vunpack.c.h.b16 %v152
    %v372 = vunpack.c.l.b16 %v153
    %v373 = vunpack.c.h.b16 %v153
    %v374 = vunpack.c.l.b16 %v154
    %v375 = vunpack.c.h.b16 %v154
    %v376 = vunpack.c.l.b16 %v155
    %v377 = vunpack.c.h.b16 %v155
    %v378 = vunpack.c.l.b16 %v156
    %v379 = vunpack.c.h.b16 %v156
    %v380 = vunpack.c.l.b16 %v157
    %v381 = vunpack.c.h.b16 %v157
    %v382 = vunpack.c.l.b16 %v158
    %v383 = vunpack.c.h.b16 %v158
    %v384 = vunpack.c.l.b16 %v159
    %v385 = vunpack.c.h.b16 %v159
    %v386 = vunpack.c.l.b16 %v160
    %v387 = vunpack.c.h.b16 %v160
    %v388 = vunpack.c.l.b16 %v161
    %v389 = vunpack.c.h.b16 %v161
    %v390 = vunpack.c.l.b16 %v162
    %v391 = vunpack.c.h.b16 %v162
    %v392 = vunpack.c.l.b16 %v163
    %v393 = vunpack.c.h.b16 %v163
    %v394 = vunpack.c.l.b16 %v164
    %v395 = vunpack.c.h.b16 %v164
    %v396 = vunpack.c.l.b16 %v165
    %v397 = vunpack.c.h.b16 %v165
    %v398 = vunpack.c.l.b16 %v166
    %v399 = vunpack.c.h.b16 %v166
    %v400 = vunpack.c.l.b16 %v167
    %v401 = vunpack.c.h.b16 %v167
    %v402 = vunpack.c.l.b16 %v168
    %v403 = vunpack.c.h.b16 %v168
    %v404 = vunpack.c.l.b16 %v169
    %v405 = vunpack.c.h.b16 %v169
    %v406 = vunpack.c.l.b16 %v170
    %v407 = vunpack.c.h.b16 %v170
    %v408 = vunpack.c.l.b16 %v171
    %v409 = vunpack.c.h.b16 %v171
    %v410 = vunpack.c.l.b16 %v172
    %v411 = vunpack.c.h.b16 %v172
    %v412 = vunpack.c.l.b16 %v173
    %v413 = vunpack.c.h.b16 %v173
    %v414 = vunpack.c.l.b16 %v174
    %v415 = vunpack.c.h.b16 %v174
    %v416 = vunpack.c.l.b16 %v175
    %v417 = vunpack.c.h.b16 %v175
    %v418 = vunpack.c.l.b16 %v176
    %v419 = vunpack.c.h.b16 %v176
    %v420 = vunpack.c.l.b16 %v177
    %v421 = vunpack.c.h.b16 %v177
    %v422 = vunpack.c.l.b16 %v178
    %v423 = vunpack.c.h.b16 %v178
    %v424 = vunpack.c.l.b16 %v179
    %v425 = vunpack.c.h.b16 %v179
    %v426 = vunpack.c.l.b16 %v180
    %v427 = vunpack.c.h.b16 %v180
    %v428 = vunpack.c.l.b16 %v181
    %v429 = vunpack.c.h.b16 %v181
    %v430 = vunpack.c.l.b16 %v182
    %v431 = vunpack.c.h.b16 %v182
    %v432 = vunpack.c.l.b16 %v183
    %v433 = vunpack.c.h.b16 %v183
    %v434 = vunpack.c.l.b16 %v184
    %v435 = vunpack.c.h.b16 %v184
    %v436 = vunpack.c.l.b16 %v185
    %v437 = vunpack.c.h.b16 %v185
    %v438 = vunpack.c.l.b16 %v186
    %v439 = vunpack.c.h.b16 %v186
    %v440 = vunpack.c.l.b16 %v187
    %v441 = vunpack.c.h.b16 %v187
    %v442 = vunpack.c.l.b16 %v188
    %v443 = vunpack.c.h.b16 %v188
    %v444 = vunpack.c.l.b16 %v189
    %v445 = vunpack.c.h.b16 %v189
    %v446 = vunpack.c.l.b16 %v190
    %v447 = vunpack.c.h.b16 %v190
    %v448 = vunpack.c.l.b16 %v191
    %v449 = vunpack.c.h.b16 %v191
    %v450 = vunpack.c.l.b16 %v192
    %v451 = vunpack.c.h.b16 %v192
    %v452 = vunpack.c.l.b16 %v193
    %v453 = vunpack.c.h.b16 %v193
    %v454 = vunpack.c.l.b16 %v194
    %v455 = vunpack.c.h.b16 %v194
    %v456 = vunpack.c.l.b16 %v195
    %v457 = vunpack.c.h.b16 %v195
    %v458 = vunpack.c.l.b16 %v196
    %v459 = vunpack.c.h.b16 %v196
    %v460 = vunpack.c.l.b16 %v197
    %v461 = vunpack.c.h.b16 %v197
    %v462 = vunpack.c.l.b16 %v198
    %v463 = vunpack.c.h.b16 %v198
    %v464 = vunpack.c.l.b16 %v199
    %v465 = vunpack.c.h.b16 %v199
    %v466 = vunpack.c.l.b16 %v200
    %v467 = vunpack.c.h.b16 %v200
    %v468 = vunpack.c.l.b16 %v201
    %v469 = vunpack.c.h.b16 %v201
    %v470 = vunpack.c.l.b16 %v202
    %v471 = vunpack.c.h.b16 %v202
    %v472 = vpack.c.b16 %v346, %v344
    %v473 = vpack.c.b16 %v347, %v345
    %v474 = vpack.c.b16 %v350, %v348
    %v475 = vpack.c.b16 %v351, %v349
    %v476 = vpack.c.b16 %v354, %v352
    %v477 = vpack.c.b16 %v355, %v353
    %v478 = vpack.c.b16 %v358, %v356
    %v479 = vpack.c.b16 %v359, %v357
    %v480 = vpack.c.b16 %v362, %v360
    %v481 = vpack.c.b16 %v363, %v361
    %v482 = vpack.c.b16 %v366, %v364
    %v483 = vpack.c.b16 %v367, %v365
    %v484 = vpack.c.b16 %v370, %v368
    %v485 = vpack.c.b16 %v371, %v369
    %v486 = vpack.c.b16 %v374, %v372
    %v487 = vpack.c.b16 %v375, %v373
    %v488 = vpack.c.b16 %v378, %v376
    %v489 = vpack.c.b16 %v379, %v377
    %v490 = vpack.c.b16 %v382, %v380
    %v491 = vpack.c.b16 %v383, %v381
    %v492 = vpack.c.b16 %v386, %v384
    %v493 = vpack.c.b16 %v387, %v385
    %v494 = vpack.c.b16 %v390, %v388
    %v495 = vpack.c.b16 %v391, %v389
    %v496 = vpack.c.b16 %v394, %v392
    %v497 = vpack.c.b16 %v395, %v393
    %v498 = vpack.c.b16 %v398, %v396
    %v499 = vpack.c.b16 %v399, %v397
    %v500 = vpack.c.b16 %v402, %v400
    %v501 = vpack.c.b16 %v403, %v401
    %v502 = vpack.c.b16 %v406, %v404
    %v503 = vpack.c.b16 %v407, %v405
    %v504 = vpack.c.b16 %v410, %v408
    %v505 = vpack.c.b16 %v411, %v409
    %v506 = vpack.c.b16 %v414, %v412
    %v507 = vpack.c.b16 %v415, %v413
    %v508 = vpack.c.b16 %v418, %v416
    %v509 = vpack.c.b16 %v419, %v417
    %v510 = vpack.c.b16 %v422, %v420
    %v511 = vpack.c.b16 %v423, %v421
    %v512 = vpack.c.b16 %v426, %v424
    %v513 = vpack.c.b16 %v427, %v425
    %v514 = vpack.c.b16 %v430, %v428
    %v515 = vpack.c.b16 %v431, %v429
    %v516 = vpack.c.b16 %v434, %v432
    %v517 = vpack.c.b16 %v435, %v433
    %v518 = vpack.c.b16 %v438, %v436
    %v519 = vpack.c.b16 %v439, %v437
    %v520 = vpack.c.b16 %v442, %v440
    %v521 = vpack.c.b16 %v443, %v441
    %v522 = vpack.c.b16 %v446, %v444
    %v523 = vpack.c.b16 %v447, %v445
    %v524 = vpack.c.b16 %v450, %v448
    %v525 = vpack.c.b16 %v451, %v449
    %v526 = vpack.c.b16 %v454, %v452
    %v527 = vpack.c.b16 %v455, %v453
    %v528 = vpack.c.b16 %v458, %v456
    %v529 = vpack.c.b16 %v459, %v457
    %v530 = vpack.c.b16 %v462, %v460
    %v531 = vpack.c.b16 %v463, %v461
    %v532 = vpack.c.b16 %v466, %v464
    %v533 = vpack.c.b16 %v467, %v465
    %v534 = vpack.c.b16 %v470, %v468
    %v535 = vpack.c.b16 %v471, %v469
    %600 = vmatprep.subr.bf16.mxu0 %v473
    %601 = vmatpush1.bf16.msra.mxu0 %v472
    %602 = vmatprep.subr.bf16.mxu0 %v475
    %603 = vmatpush1.bf16.msra.mxu0 %v474
    %604 = vmatprep.subr.bf16.mxu0 %v477
    %605 = vmatpush1.bf16.msra.mxu0 %v476
    %606 = vmatprep.subr.bf16.mxu0 %v479
    %607 = vmatpush1.bf16.msra.mxu0 %v478
    %608 = vmatprep.subr.bf16.mxu0 %v481
    %609 = vmatpush1.bf16.msra.mxu0 %v480
    %610 = vmatprep.subr.bf16.mxu0 %v483
    %611 = vmatpush1.bf16.msra.mxu0 %v482
    %612 = vmatprep.subr.bf16.mxu0 %v485
    %613 = vmatpush1.bf16.msra.mxu0 %v484
    %614 = vmatprep.subr.bf16.mxu0 %v487
    %615 = vmatpush1.bf16.msra.mxu0 %v486
    %616 = vmatprep.subr.bf16.mxu0 %v489
    %617 = vmatpush1.bf16.msra.mxu0 %v488
    %618 = vmatprep.subr.bf16.mxu0 %v491
    %619 = vmatpush1.bf16.msra.mxu0 %v490
    %620 = vmatprep.subr.bf16.mxu0 %v493
    %621 = vmatpush1.bf16.msra.mxu0 %v492
    %622 = vmatprep.subr.bf16.mxu0 %v495
    %623 = vmatpush1.bf16.msra.mxu0 %v494
    %624 = vmatprep.subr.bf16.mxu0 %v497
    %625 = vmatpush1.bf16.msra.mxu0 %v496
    %626 = vmatprep.subr.bf16.mxu0 %v499
    %627 = vmatpush1.bf16.msra.mxu0 %v498
    %628 = vmatprep.subr.bf16.mxu0 %v501
    %629 = vmatpush1.bf16.msra.mxu0 %v500
    %630 = vmatprep.subr.bf16.mxu0 %v503
    %631 = vmatpush1.bf16.msra.mxu0 %v502
    %632 = vmatprep.mubr.bf16.mxu0 %v273
    %633 = vmatmul.mubr.bf16.gmra.mrb[0].mxu0 %v272
    %v634 = vpop.f32.mrb[0].mxu0
    %v635 = vadd.f32 0.0, %v634
    %v636 = vpop.f32.mrb[0].mxu0
    %v637 = vadd.f32 0.0, %v636
    %v638 = vpop.f32.mrb[0].mxu0
    %v639 = vadd.f32 0.0, %v638
    %v640 = vpop.f32.mrb[0].mxu0
    %v641 = vadd.f32 0.0, %v640
    %642 = vmatprep.mubr.bf16.mxu0 %v277
    %643 = vmatmul.mubr.bf16.gmra.mrb[0].mxu0 %v276
    %v644 = vpop.f32.mrb[0].mxu0
    %v645 = vadd.f32 0.0, %v644
    %v646 = vpop.f32.mrb[0].mxu0
    %v647 = vadd.f32 0.0, %v646
    %v648 = vpop.f32.mrb[0].mxu0
    %v649 = vadd.f32 0.0, %v648
    %v650 = vpop.f32.mrb[0].mxu0
    %v651 = vadd.f32 0.0, %v650
    %652 = vdwg.mxu0
    %653 = vmatprep.subr.bf16.mxu0 %v505
    %654 = vmatpush1.bf16.msra.mxu0 %v504
    %655 = vmatprep.subr.bf16.mxu0 %v507
    %656 = vmatpush1.bf16.msra.mxu0 %v506
    %657 = vmatprep.subr.bf16.mxu0 %v509
    %658 = vmatpush1.bf16.msra.mxu0 %v508
    %659 = vmatprep.subr.bf16.mxu0 %v511
    %660 = vmatpush1.bf16.msra.mxu0 %v510
    %661 = vmatprep.subr.bf16.mxu0 %v513
    %662 = vmatpush1.bf16.msra.mxu0 %v512
    %663 = vmatprep.subr.bf16.mxu0 %v515
    %664 = vmatpush1.bf16.msra.mxu0 %v514
    %665 = vmatprep.subr.bf16.mxu0 %v517
    %666 = vmatpush1.bf16.msra.mxu0 %v516
    %667 = vmatprep.subr.bf16.mxu0 %v519
    %668 = vmatpush1.bf16.msra.mxu0 %v518
    %669 = vmatprep.subr.bf16.mxu0 %v521
    %670 = vmatpush1.bf16.msra.mxu0 %v520
    %671 = vmatprep.subr.bf16.mxu0 %v523
    %672 = vmatpush1.bf16.msra.mxu0 %v522
    %673 = vmatprep.subr.bf16.mxu0 %v525
    %674 = vmatpush1.bf16.msra.mxu0 %v524
    %675 = vmatprep.subr.bf16.mxu0 %v527
    %676 = vmatpush1.bf16.msra.mxu0 %v526
    %677 = vmatprep.subr.bf16.mxu0 %v529
    %678 = vmatpush1.bf16.msra.mxu0 %v528
    %679 = vmatprep.subr.bf16.mxu0 %v531
    %680 = vmatpush1.bf16.msra.mxu0 %v530
    %681 = vmatprep.subr.bf16.mxu0 %v533
    %682 = vmatpush1.bf16.msra.mxu0 %v532
    %683 = vmatprep.subr.bf16.mxu0 %v535
    %684 = vmatpush1.bf16.msra.mxu0 %v534
    %685 = vmatprep.mubr.bf16.mxu0 %v275
    %686 = vmatmul.mubr.bf16.gmra.mrb[0].mxu0 %v274
    %v687 = vpop.f32.mrb[0].mxu0
    %v688 = vadd.f32 %v635, %v687
    %v689 = vpop.f32.mrb[0].mxu0
    %v690 = vadd.f32 %v637, %v689
    %v691 = vpop.f32.mrb[0].mxu0
    %v692 = vadd.f32 %v639, %v691
    %v693 = vpop.f32.mrb[0].mxu0
    %v694 = vadd.f32 %v641, %v693
    %695 = vmatprep.mubr.bf16.mxu0 %v279
    %696 = vmatmul.mubr.bf16.gmra.mrb[0].mxu0 %v278
    %v697 = vpop.f32.mrb[0].mxu0
    %v698 = vadd.f32 %v645, %v697
    %v699 = vpop.f32.mrb[0].mxu0
    %v700 = vadd.f32 %v647, %v699
    %v701 = vpop.f32.mrb[0].mxu0
    %v702 = vadd.f32 %v649, %v701
    %v703 = vpop.f32.mrb[0].mxu0
    %v704 = vadd.f32 %v651, %v703
    %705 = vdwg.mxu0
    %v706 = vlaneseq
    %v707 = vshrl.u32 %v706, 7
    %v708 = vsub.s32 0, %v707
    %v709 = vrot.slane %v121, %v708
    %v710 = vadd.f32 %v688, %v709
    %v711 = vadd.f32 %v692, %v709
    %v712 = vadd.f32 %v698, %v709
    %v713 = vadd.f32 %v702, %v709
    %v714 = vmax.f32 %v710, 0.0
    %v715 = vmax.f32 %v711, 0.0
    %v716 = vmax.f32 %v712, 0.0
    %v717 = vmax.f32 %v713, 0.0
    %v718 = vlaneseq
    %v719 = vshrl.u32 %v718, 7
    %v720 = vsub.s32 1, %v719
    %v721 = vrot.slane %v121, %v720
    %v722 = vadd.f32 %v690, %v721
    %v723 = vadd.f32 %v694, %v721
    %v724 = vadd.f32 %v700, %v721
    %v725 = vadd.f32 %v704, %v721
    %v726 = vrot.slane %v714, 7
    %v727 = vrot.slane %v715, 7
    %v728 = vrot.slane %v716, 7
    %v729 = vrot.slane %v717, 7
    %v730 = vsel %vm243, %v728, %v729
    %v731 = vsel %vm243, %v727, %v728
    %v732 = vsel %vm243, %v726, %v727
    %v733 = vsel %vm243, %v729, %v726
    %v734 = vsel %vm260, %v733, 0.0
    %v735 = vsel %vm261, %v732, 0.0
    %v736 = vsel %vm262, %v731, 0.0
    %v737 = vsel %vm263, %v730, 0.0
    %v738 = vpack.c.bf16 %v715, %v714
    %v739 = vpack.c.bf16 %v735, %v734
    %v740 = vpack.c.bf16 %v717, %v716
    %v741 = vpack.c.bf16 %v737, %v736
    %v742 = vlaneseq
    %v743 = vshrl.u32 %v742, 7
    %v744 = vsub.s32 2, %v743
    %v745 = vrot.slane %v121, %v744
    %v778 = vunpack.c.l.b16 %v203
    %v779 = vunpack.c.l.b16 %v204
    %v780 = vunpack.c.l.b16 %v205
    %v781 = vunpack.c.l.b16 %v206
    %v782 = vunpack.c.l.b16 %v207
    %v783 = vunpack.c.l.b16 %v208
    %v784 = vunpack.c.l.b16 %v209
    %v785 = vunpack.c.l.b16 %v210
    %v786 = vunpack.c.l.b16 %v211
    %v787 = vunpack.c.l.b16 %v212
    %v788 = vunpack.c.l.b16 %v213
    %v789 = vunpack.c.l.b16 %v214
    %v790 = vunpack.c.l.b16 %v215
    %v791 = vunpack.c.l.b16 %v216
    %v792 = vunpack.c.l.b16 %v217
    %v793 = vunpack.c.l.b16 %v218
    %v794 = vunpack.c.l.b16 %v219
    %v795 = vunpack.c.l.b16 %v220
    %v796 = vunpack.c.l.b16 %v221
    %v797 = vunpack.c.l.b16 %v222
    %v798 = vunpack.c.l.b16 %v223
    %v799 = vunpack.c.l.b16 %v224
    %v800 = vunpack.c.l.b16 %v225
    %v801 = vunpack.c.l.b16 %v226
    %v802 = vunpack.c.l.b16 %v227
    %v803 = vunpack.c.l.b16 %v228
    %v804 = vunpack.c.l.b16 %v229
    %v805 = vunpack.c.l.b16 %v230
    %v806 = vunpack.c.l.b16 %v231
    %v807 = vunpack.c.l.b16 %v232
    %v808 = vunpack.c.l.b16 %v233
    %v809 = vunpack.c.l.b16 %v234
    %v810 = vpack.c.b16 %v779, %v778
    %v811 = vpack.c.b16 %v781, %v780
    %v812 = vpack.c.b16 %v783, %v782
    %v813 = vpack.c.b16 %v785, %v784
    %v814 = vpack.c.b16 %v787, %v786
    %v815 = vpack.c.b16 %v789, %v788
    %v816 = vpack.c.b16 %v791, %v790
    %v817 = vpack.c.b16 %v793, %v792
    %v818 = vpack.c.b16 %v795, %v794
    %v819 = vpack.c.b16 %v797, %v796
    %v820 = vpack.c.b16 %v799, %v798
    %v821 = vpack.c.b16 %v801, %v800
    %v822 = vpack.c.b16 %v803, %v802
    %v823 = vpack.c.b16 %v805, %v804
    %v824 = vpack.c.b16 %v807, %v806
    %v825 = vpack.c.b16 %v809, %v808
    %842 = vmatprep.subr.bf16.mxu0 0
    %843 = vmatpush1.bf16.msra.mxu0 %v810
    %844 = vmatprep.subr.bf16.mxu0 0
    %845 = vmatpush1.bf16.msra.mxu0 %v811
    %846 = vmatprep.subr.bf16.mxu0 0
    %847 = vmatpush1.bf16.msra.mxu0 %v812
    %848 = vmatprep.subr.bf16.mxu0 0
    %849 = vmatpush1.bf16.msra.mxu0 %v813
    %850 = vmatprep.subr.bf16.mxu0 0
    %851 = vmatpush1.bf16.msra.mxu0 %v814
    %852 = vmatprep.subr.bf16.mxu0 0
    %853 = vmatpush1.bf16.msra.mxu0 %v815
    %854 = vmatprep.subr.bf16.mxu0 0
    %855 = vmatpush1.bf16.msra.mxu0 %v816
    %856 = vmatprep.subr.bf16.mxu0 0
    %857 = vmatpush1.bf16.msra.mxu0 %v817
    %858 = vmatprep.subr.bf16.mxu0 0
    %859 = vmatpush1.bf16.msra.mxu0 %v818
    %860 = vmatprep.subr.bf16.mxu0 0
    %861 = vmatpush1.bf16.msra.mxu0 %v819
    %862 = vmatprep.subr.bf16.mxu0 0
    %863 = vmatpush1.bf16.msra.mxu0 %v820
    %864 = vmatprep.subr.bf16.mxu0 0
    %865 = vmatpush1.bf16.msra.mxu0 %v821
    %866 = vmatprep.subr.bf16.mxu0 0
    %867 = vmatpush1.bf16.msra.mxu0 %v822
    %868 = vmatprep.subr.bf16.mxu0 0
    %869 = vmatpush1.bf16.msra.mxu0 %v823
    %870 = vmatprep.subr.bf16.mxu0 0
    %871 = vmatpush1.bf16.msra.mxu0 %v824
    %872 = vmatprep.subr.bf16.mxu0 0
    %873 = vmatpush1.bf16.msra.mxu0 %v825
    %874 = vmatprep.mubr.bf16.mxu0 %v739
    %875 = vmatmul.mubr.bf16.gmra.mrb[0].mxu0 %v738
    %v876 = vpop.f32.mrb[0].mxu0
    %v877 = vadd.f32 %v745, %v876
    %v878 = vpop.f32.mrb[0].mxu0
    %v879 = vpop.f32.mrb[0].mxu0
    %v880 = vadd.f32 %v745, %v879
    %v881 = vpop.f32.mrb[0].mxu0
    %882 = vmatprep.mubr.bf16.mxu0 %v741
    %883 = vmatmul.mubr.bf16.gmra.mrb[0].mxu0 %v740
    %v884 = vpop.f32.mrb[0].mxu0
    %v885 = vadd.f32 %v745, %v884
    %v886 = vpop.f32.mrb[0].mxu0
    %v887 = vpop.f32.mrb[0].mxu0
    %v888 = vadd.f32 %v745, %v887
    %v889 = vpop.f32.mrb[0].mxu0
    %890 = vdwg.mxu0
    %v891 = vmax.f32 %v877, 0.0
    %v892 = vmax.f32 %v880, 0.0
    %v893 = vmax.f32 %v885, 0.0
    %v894 = vmax.f32 %v888, 0.0
    %v895 = vadd.f32 %v891, %v722
    %v896 = vadd.f32 %v892, %v723
    %v897 = vadd.f32 %v893, %v724
    %v898 = vadd.f32 %v894, %v725
    %v899 = vmax.f32 %v895, 0.0
    %v900 = vmax.f32 %v896, 0.0
    %v901 = vmax.f32 %v897, 0.0
    %v902 = vmax.f32 %v898, 0.0
    %v903 = vld [vmem:[#allocation10] sm:$0xf]
    %v904 = vld [vmem:[#allocation10 + $0x4] sm:$0xf]
    %v905 = vld [vmem:[#allocation10 + $0x8] sm:$0xf]
    %v906 = vld [vmem:[#allocation10 + $0xc] sm:$0xf]
    %v907 = vld [vmem:[#allocation10 + $0x10] sm:$0xf]
    %v908 = vld [vmem:[#allocation10 + $0x14] sm:$0xf]
    %v909 = vld [vmem:[#allocation10 + $0x18] sm:$0xf]
    %v910 = vld [vmem:[#allocation10 + $0x1c] sm:$0xf]
    %v911 = vld [vmem:[#allocation10 + $0x20] sm:$0xf]
    %v912 = vld [vmem:[#allocation10 + $0x24] sm:$0xf]
    %v913 = vld [vmem:[#allocation10 + $0x28] sm:$0xf]
    %v914 = vld [vmem:[#allocation10 + $0x2c] sm:$0xf]
    %v915 = vld [vmem:[#allocation10 + $0x30] sm:$0xf]
    %v916 = vld [vmem:[#allocation10 + $0x34] sm:$0xf]
    %v917 = vld [vmem:[#allocation10 + $0x38] sm:$0xf]
    %v918 = vld [vmem:[#allocation10 + $0x3c] sm:$0xf]
    %v919 = vld [vmem:[#allocation10 + $0x40] sm:$0xf]
    %v920 = vld [vmem:[#allocation10 + $0x44] sm:$0xf]
    %v921 = vld [vmem:[#allocation10 + $0x48] sm:$0xf]
    %v922 = vld [vmem:[#allocation10 + $0x4c] sm:$0xf]
    %v923 = vld [vmem:[#allocation10 + $0x50] sm:$0xf]
    %v924 = vld [vmem:[#allocation10 + $0x54] sm:$0xf]
    %v925 = vld [vmem:[#allocation10 + $0x58] sm:$0xf]
    %v926 = vld [vmem:[#allocation10 + $0x5c] sm:$0xf]
    %v927 = vld [vmem:[#allocation10 + $0x60] sm:$0xf]
    %v928 = vld [vmem:[#allocation10 + $0x64] sm:$0xf]
    %v929 = vld [vmem:[#allocation10 + $0x68] sm:$0xf]
    %v930 = vld [vmem:[#allocation10 + $0x6c] sm:$0xf]
    %v931 = vld [vmem:[#allocation10 + $0x70] sm:$0xf]
    %v932 = vld [vmem:[#allocation10 + $0x74] sm:$0xf]
    %v933 = vld [vmem:[#allocation10 + $0x78] sm:$0xf]
    %v934 = vld [vmem:[#allocation10 + $0x7c] sm:$0xf]
    %v935 = vld [vmem:[#allocation11] sm:$0xf]
    %v936 = vld [vmem:[#allocation11 + $0x4] sm:$0xf]
    %v937 = vld [vmem:[#allocation11 + $0x8] sm:$0xf]
    %v938 = vld [vmem:[#allocation11 + $0xc] sm:$0xf]
    %v939 = vld [vmem:[#allocation11 + $0x10] sm:$0xf]
    %v940 = vld [vmem:[#allocation11 + $0x14] sm:$0xf]
    %v941 = vld [vmem:[#allocation11 + $0x18] sm:$0xf]
    %v942 = vld [vmem:[#allocation11 + $0x1c] sm:$0xf]
    %v943 = vld [vmem:[#allocation11 + $0x20] sm:$0xf]
    %v944 = vld [vmem:[#allocation11 + $0x24] sm:$0xf]
    %v945 = vld [vmem:[#allocation11 + $0x28] sm:$0xf]
    %v946 = vld [vmem:[#allocation11 + $0x2c] sm:$0xf]
    %v947 = vld [vmem:[#allocation11 + $0x30] sm:$0xf]
    %v948 = vld [vmem:[#allocation11 + $0x34] sm:$0xf]
    %v949 = vld [vmem:[#allocation11 + $0x38] sm:$0xf]
    %v950 = vld [vmem:[#allocation11 + $0x3c] sm:$0xf]
    %v951 = vld [vmem:[#allocation11 + $0x40] sm:$0xf]
    %v952 = vld [vmem:[#allocation11 + $0x44] sm:$0xf]
    %v953 = vld [vmem:[#allocation11 + $0x48] sm:$0xf]
    %v954 = vld [vmem:[#allocation11 + $0x4c] sm:$0xf]
    %v955 = vld [vmem:[#allocation11 + $0x50] sm:$0xf]
    %v956 = vld [vmem:[#allocation11 + $0x54] sm:$0xf]
    %v957 = vld [vmem:[#allocation11 + $0x58] sm:$0xf]
    %v958 = vld [vmem:[#allocation11 + $0x5c] sm:$0xf]
    %v959 = vld [vmem:[#allocation11 + $0x60] sm:$0xf]
    %v960 = vld [vmem:[#allocation11 + $0x64] sm:$0xf]
    %v961 = vld [vmem:[#allocation11 + $0x68] sm:$0xf]
    %v962 = vld [vmem:[#allocation11 + $0x6c] sm:$0xf]
    %v963 = vld [vmem:[#allocation11 + $0x70] sm:$0xf]
    %v964 = vld [vmem:[#allocation11 + $0x74] sm:$0xf]
    %v965 = vld [vmem:[#allocation11 + $0x78] sm:$0xf]
    %v966 = vld [vmem:[#allocation11 + $0x7c] sm:$0xf]
    %v967 = vrot.slane %v899, 6
    %v968 = vrot.slane %v900, 6
    %v969 = vrot.slane %v901, 6
    %v970 = vrot.slane %v902, 6
    %vm971 = vcmp.lt.s32.totalorder %v123, 2
    %v972 = vsel %vm971, %v969, %v970
    %v973 = vsel %vm971, %v968, %v969
    %v974 = vsel %vm971, %v967, %v968
    %v975 = vsel %vm971, %v970, %v967
    %vm976 = vcmp.ge.s32.totalorder %v127, 2
    %vm977 = vcmp.ge.s32.totalorder %v128, 2
    %vm978 = vcmp.ge.s32.totalorder %v129, 2
    %vm979 = vcmp.ge.s32.totalorder %v130, 2
    %v980 = vsel %vm976, 1, 0
    %v981 = vsel %vm977, 1, 0
    %v982 = vsel %vm978, 1, 0
    %v983 = vsel %vm979, 1, 0
    %vm984 = vcmp.eq.s32.totalorder %v980, 1
    %vm985 = vcmp.eq.s32.totalorder %v981, 1
    %vm986 = vcmp.eq.s32.totalorder %v982, 1
    %vm987 = vcmp.eq.s32.totalorder %v983, 1
    %v988 = vsel %vm984, %v975, 0.0
    %v989 = vsel %vm985, %v974, 0.0
    %v990 = vsel %vm986, %v973, 0.0
    %v991 = vsel %vm987, %v972, 0.0
    %v992 = vpack.c.bf16 %v900, %v899
    %v993 = vpack.c.bf16 %v989, %v988
    %v994 = vpack.c.bf16 %v902, %v901
    %v995 = vpack.c.bf16 %v991, %v990
    %v996 = vlaneseq
    %v997 = vshrl.u32 %v996, 7
    %v998 = vsub.s32 3, %v997
    %v999 = vrot.slane %v121, %v998
    %v1032 = vunpack.c.l.b16 %v903
    %v1033 = vunpack.c.l.b16 %v904
    %v1034 = vunpack.c.l.b16 %v905
    %v1035 = vunpack.c.l.b16 %v906
    %v1036 = vunpack.c.l.b16 %v907
    %v1037 = vunpack.c.l.b16 %v908
    %v1038 = vunpack.c.l.b16 %v909
    %v1039 = vunpack.c.l.b16 %v910
    %v1040 = vunpack.c.l.b16 %v911
    %v1041 = vunpack.c.l.b16 %v912
    %v1042 = vunpack.c.l.b16 %v913
    %v1043 = vunpack.c.l.b16 %v914
    %v1044 = vunpack.c.l.b16 %v915
    %v1045 = vunpack.c.l.b16 %v916
    %v1046 = vunpack.c.l.b16 %v917
    %v1047 = vunpack.c.l.b16 %v918
    %v1048 = vunpack.c.l.b16 %v919
    %v1049 = vunpack.c.l.b16 %v920
    %v1050 = vunpack.c.l.b16 %v921
    %v1051 = vunpack.c.l.b16 %v922
    %v1052 = vunpack.c.l.b16 %v923
    %v1053 = vunpack.c.l.b16 %v924
    %v1054 = vunpack.c.l.b16 %v925
    %v1055 = vunpack.c.l.b16 %v926
    %v1056 = vunpack.c.l.b16 %v927
    %v1057 = vunpack.c.l.b16 %v928
    %v1058 = vunpack.c.l.b16 %v929
    %v1059 = vunpack.c.l.b16 %v930
    %v1060 = vunpack.c.l.b16 %v931
    %v1061 = vunpack.c.l.b16 %v932
    %v1062 = vunpack.c.l.b16 %v933
    %v1063 = vunpack.c.l.b16 %v934
    %v1064 = vpack.c.b16 %v1033, %v1032
    %v1065 = vpack.c.b16 %v1035, %v1034
    %v1066 = vpack.c.b16 %v1037, %v1036
    %v1067 = vpack.c.b16 %v1039, %v1038
    %v1068 = vpack.c.b16 %v1041, %v1040
    %v1069 = vpack.c.b16 %v1043, %v1042
    %v1070 = vpack.c.b16 %v1045, %v1044
    %v1071 = vpack.c.b16 %v1047, %v1046
    %v1072 = vpack.c.b16 %v1049, %v1048
    %v1073 = vpack.c.b16 %v1051, %v1050
    %v1074 = vpack.c.b16 %v1053, %v1052
    %v1075 = vpack.c.b16 %v1055, %v1054
    %v1076 = vpack.c.b16 %v1057, %v1056
    %v1077 = vpack.c.b16 %v1059, %v1058
    %v1078 = vpack.c.b16 %v1061, %v1060
    %v1079 = vpack.c.b16 %v1063, %v1062
    %1096 = vmatprep.subr.bf16.mxu0 0
    %1097 = vmatpush1.bf16.msra.mxu0 %v1064
    %1098 = vmatprep.subr.bf16.mxu0 0
    %1099 = vmatpush1.bf16.msra.mxu0 %v1065
    %1100 = vmatprep.subr.bf16.mxu0 0
    %1101 = vmatpush1.bf16.msra.mxu0 %v1066
    %1102 = vmatprep.subr.bf16.mxu0 0
    %1103 = vmatpush1.bf16.msra.mxu0 %v1067
    %1104 = vmatprep.subr.bf16.mxu0 0
    %1105 = vmatpush1.bf16.msra.mxu0 %v1068
    %1106 = vmatprep.subr.bf16.mxu0 0
    %1107 = vmatpush1.bf16.msra.mxu0 %v1069
    %1108 = vmatprep.subr.bf16.mxu0 0
    %1109 = vmatpush1.bf16.msra.mxu0 %v1070
    %1110 = vmatprep.subr.bf16.mxu0 0
    %1111 = vmatpush1.bf16.msra.mxu0 %v1071
    %1112 = vmatprep.subr.bf16.mxu0 0
    %1113 = vmatpush1.bf16.msra.mxu0 %v1072
    %1114 = vmatprep.subr.bf16.mxu0 0
    %1115 = vmatpush1.bf16.msra.mxu0 %v1073
    %1116 = vmatprep.subr.bf16.mxu0 0
    %1117 = vmatpush1.bf16.msra.mxu0 %v1074
    %1118 = vmatprep.subr.bf16.mxu0 0
    %1119 = vmatpush1.bf16.msra.mxu0 %v1075
    %1120 = vmatprep.subr.bf16.mxu0 0
    %1121 = vmatpush1.bf16.msra.mxu0 %v1076
    %1122 = vmatprep.subr.bf16.mxu0 0
    %1123 = vmatpush1.bf16.msra.mxu0 %v1077
    %1124 = vmatprep.subr.bf16.mxu0 0
    %1125 = vmatpush1.bf16.msra.mxu0 %v1078
    %1126 = vmatprep.subr.bf16.mxu0 0
    %1127 = vmatpush1.bf16.msra.mxu0 %v1079
    %1128 = vmatprep.mubr.bf16.mxu0 %v993
    %1129 = vmatmul.mubr.bf16.gmra.mrb[0].mxu0 %v992
    %v1130 = vpop.f32.mrb[0].mxu0
    %v1131 = vadd.f32 %v999, %v1130
    %v1132 = vpop.f32.mrb[0].mxu0
    %v1133 = vpop.f32.mrb[0].mxu0
    %v1134 = vadd.f32 %v999, %v1133
    %v1135 = vpop.f32.mrb[0].mxu0
    %1136 = vmatprep.mubr.bf16.mxu0 %v995
    %1137 = vmatmul.mubr.bf16.gmra.mrb[0].mxu0 %v994
    %v1138 = vpop.f32.mrb[0].mxu0
    %v1139 = vadd.f32 %v999, %v1138
    %v1140 = vpop.f32.mrb[0].mxu0
    %v1141 = vpop.f32.mrb[0].mxu0
    %v1142 = vadd.f32 %v999, %v1141
    %v1143 = vpop.f32.mrb[0].mxu0
    %1144 = vdwg.mxu0
    %v1145 = vmax.f32 %v1131, 0.0
    %v1146 = vmax.f32 %v1134, 0.0
    %v1147 = vmax.f32 %v1139, 0.0
    %v1148 = vmax.f32 %v1142, 0.0
    %v1149 = vrot.slane %v1145, 6
    %v1150 = vrot.slane %v1146, 6
    %v1151 = vrot.slane %v1147, 6
    %v1152 = vrot.slane %v1148, 6
    %v1153 = vsel %vm971, %v1151, %v1152
    %v1154 = vsel %vm971, %v1150, %v1151
    %v1155 = vsel %vm971, %v1149, %v1150
    %v1156 = vsel %vm971, %v1152, %v1149
    %v1157 = vsel %vm984, %v1156, 0.0
    %v1158 = vsel %vm985, %v1155, 0.0
    %v1159 = vsel %vm986, %v1154, 0.0
    %v1160 = vsel %vm987, %v1153, 0.0
    %v1161 = vpack.c.bf16 %v1146, %v1145
    %v1162 = vpack.c.bf16 %v1158, %v1157
    %v1163 = vpack.c.bf16 %v1148, %v1147
    %v1164 = vpack.c.bf16 %v1160, %v1159
    %v1165 = vlaneseq
    %v1166 = vshrl.u32 %v1165, 7
    %v1167 = vsub.s32 4, %v1166
    %v1168 = vrot.slane %v121, %v1167
    %v1201 = vunpack.c.l.b16 %v935
    %v1202 = vunpack.c.l.b16 %v936
    %v1203 = vunpack.c.l.b16 %v937
    %v1204 = vunpack.c.l.b16 %v938
    %v1205 = vunpack.c.l.b16 %v939
    %v1206 = vunpack.c.l.b16 %v940
    %v1207 = vunpack.c.l.b16 %v941
    %v1208 = vunpack.c.l.b16 %v942
    %v1209 = vunpack.c.l.b16 %v943
    %v1210 = vunpack.c.l.b16 %v944
    %v1211 = vunpack.c.l.b16 %v945
    %v1212 = vunpack.c.l.b16 %v946
    %v1213 = vunpack.c.l.b16 %v947
    %v1214 = vunpack.c.l.b16 %v948
    %v1215 = vunpack.c.l.b16 %v949
    %v1216 = vunpack.c.l.b16 %v950
    %v1217 = vunpack.c.l.b16 %v951
    %v1218 = vunpack.c.l.b16 %v952
    %v1219 = vunpack.c.l.b16 %v953
    %v1220 = vunpack.c.l.b16 %v954
    %v1221 = vunpack.c.l.b16 %v955
    %v1222 = vunpack.c.l.b16 %v956
    %v1223 = vunpack.c.l.b16 %v957
    %v1224 = vunpack.c.l.b16 %v958
    %v1225 = vunpack.c.l.b16 %v959
    %v1226 = vunpack.c.l.b16 %v960
    %v1227 = vunpack.c.l.b16 %v961
    %v1228 = vunpack.c.l.b16 %v962
    %v1229 = vunpack.c.l.b16 %v963
    %v1230 = vunpack.c.l.b16 %v964
    %v1231 = vunpack.c.l.b16 %v965
    %v1232 = vunpack.c.l.b16 %v966
    %v1233 = vpack.c.b16 %v1202, %v1201
    %v1234 = vpack.c.b16 %v1204, %v1203
    %v1235 = vpack.c.b16 %v1206, %v1205
    %v1236 = vpack.c.b16 %v1208, %v1207
    %v1237 = vpack.c.b16 %v1210, %v1209
    %v1238 = vpack.c.b16 %v1212, %v1211
    %v1239 = vpack.c.b16 %v1214, %v1213
    %v1240 = vpack.c.b16 %v1216, %v1215
    %v1241 = vpack.c.b16 %v1218, %v1217
    %v1242 = vpack.c.b16 %v1220, %v1219
    %v1243 = vpack.c.b16 %v1222, %v1221
    %v1244 = vpack.c.b16 %v1224, %v1223
    %v1245 = vpack.c.b16 %v1226, %v1225
    %v1246 = vpack.c.b16 %v1228, %v1227
    %v1247 = vpack.c.b16 %v1230, %v1229
    %v1248 = vpack.c.b16 %v1232, %v1231
    %1265 = vmatprep.subr.bf16.mxu0 0
    %1266 = vmatpush1.bf16.msra.mxu0 %v1233
    %1267 = vmatprep.subr.bf16.mxu0 0
    %1268 = vmatpush1.bf16.msra.mxu0 %v1234
    %1269 = vmatprep.subr.bf16.mxu0 0
    %1270 = vmatpush1.bf16.msra.mxu0 %v1235
    %1271 = vmatprep.subr.bf16.mxu0 0
    %1272 = vmatpush1.bf16.msra.mxu0 %v1236
    %1273 = vmatprep.subr.bf16.mxu0 0
    %1274 = vmatpush1.bf16.msra.mxu0 %v1237
    %1275 = vmatprep.subr.bf16.mxu0 0
    %1276 = vmatpush1.bf16.msra.mxu0 %v1238
    %1277 = vmatprep.subr.bf16.mxu0 0
    %1278 = vmatpush1.bf16.msra.mxu0 %v1239
    %1279 = vmatprep.subr.bf16.mxu0 0
    %1280 = vmatpush1.bf16.msra.mxu0 %v1240
    %1281 = vmatprep.subr.bf16.mxu0 0
    %1282 = vmatpush1.bf16.msra.mxu0 %v1241
    %1283 = vmatprep.subr.bf16.mxu0 0
    %1284 = vmatpush1.bf16.msra.mxu0 %v1242
    %1285 = vmatprep.subr.bf16.mxu0 0
    %1286 = vmatpush1.bf16.msra.mxu0 %v1243
    %1287 = vmatprep.subr.bf16.mxu0 0
    %1288 = vmatpush1.bf16.msra.mxu0 %v1244
    %1289 = vmatprep.subr.bf16.mxu0 0
    %1290 = vmatpush1.bf16.msra.mxu0 %v1245
    %1291 = vmatprep.subr.bf16.mxu0 0
    %1292 = vmatpush1.bf16.msra.mxu0 %v1246
    %1293 = vmatprep.subr.bf16.mxu0 0
    %1294 = vmatpush1.bf16.msra.mxu0 %v1247
    %1295 = vmatprep.subr.bf16.mxu0 0
    %1296 = vmatpush1.bf16.msra.mxu0 %v1248
    %1297 = vmatprep.mubr.bf16.mxu0 %v1162
    %1298 = vmatmul.mubr.bf16.gmra.mrb[0].mxu0 %v1161
    %v1299 = vpop.f32.mrb[0].mxu0
    %v1300 = vadd.f32 %v1168, %v1299
    %v1301 = vpop.f32.mrb[0].mxu0
    %v1302 = vpop.f32.mrb[0].mxu0
    %v1303 = vadd.f32 %v1168, %v1302
    %v1304 = vpop.f32.mrb[0].mxu0
    %1305 = vmatprep.mubr.bf16.mxu0 %v1164
    %1306 = vmatmul.mubr.bf16.gmra.mrb[0].mxu0 %v1163
    %v1307 = vpop.f32.mrb[0].mxu0
    %v1308 = vadd.f32 %v1168, %v1307
    %v1309 = vpop.f32.mrb[0].mxu0
    %v1310 = vpop.f32.mrb[0].mxu0
    %v1311 = vadd.f32 %v1168, %v1310
    %v1312 = vpop.f32.mrb[0].mxu0
    %1313 = vdwg.mxu0
    %v1314 = vmax.f32 %v1300, 0.0
    %v1315 = vmax.f32 %v1303, 0.0
    %v1316 = vmax.f32 %v1308, 0.0
    %v1317 = vmax.f32 %v1311, 0.0
    %v1318 = vadd.f32 %v1314, %v899
    %v1319 = vadd.f32 %v1315, %v900
    %v1320 = vadd.f32 %v1316, %v901
    %v1321 = vadd.f32 %v1317, %v902
    %v1322 = vmax.f32 %v1318, 0.0
    %v1323 = vmax.f32 %v1319, 0.0
    %v1324 = vmax.f32 %v1320, 0.0
    %v1325 = vmax.f32 %v1321, 0.0
    %v1326 = vpack.c.bf16 %v1323, %v1322
    %v1327 = vpack.c.bf16 %v1325, %v1324
    %v1328 = vld [vmem:[#allocation13] sm:$0xf]
    %v1329 = vld [vmem:[#allocation13 + $0x4] sm:$0xf]
    %v1330 = vld [vmem:[#allocation13 + $0x8] sm:$0xf]
    %v1331 = vld [vmem:[#allocation13 + $0xc] sm:$0xf]
    %v1332 = vld [vmem:[#allocation13 + $0x10] sm:$0xf]
    %v1333 = vld [vmem:[#allocation13 + $0x14] sm:$0xf]
    %v1334 = vld [vmem:[#allocation13 + $0x18] sm:$0xf]
    %v1335 = vld [vmem:[#allocation13 + $0x1c] sm:$0xf]
    %v1336 = vld [vmem:[#allocation13 + $0x20] sm:$0xf]
    %v1337 = vld [vmem:[#allocation13 + $0x24] sm:$0xf]
    %v1338 = vld [vmem:[#allocation13 + $0x28] sm:$0xf]
    %v1339 = vld [vmem:[#allocation13 + $0x2c] sm:$0xf]
    %v1340 = vld [vmem:[#allocation13 + $0x30] sm:$0xf]
    %v1341 = vld [vmem:[#allocation13 + $0x34] sm:$0xf]
    %v1342 = vld [vmem:[#allocation13 + $0x38] sm:$0xf]
    %v1343 = vld [vmem:[#allocation13 + $0x3c] sm:$0xf]
    %v1344 = vlaneseq
    %v1345 = vshrl.u32 %v1344, 7
    %v1346 = vsub.s32 5, %v1345
    %v1347 = vrot.slane %v121, %v1346
    %v1364 = vunpack.c.l.b16 %v1328
    %v1365 = vunpack.c.l.b16 %v1329
    %v1366 = vunpack.c.l.b16 %v1330
    %v1367 = vunpack.c.l.b16 %v1331
    %v1368 = vunpack.c.l.b16 %v1332
    %v1369 = vunpack.c.l.b16 %v1333
    %v1370 = vunpack.c.l.b16 %v1334
    %v1371 = vunpack.c.l.b16 %v1335
    %v1372 = vunpack.c.l.b16 %v1336
    %v1373 = vunpack.c.l.b16 %v1337
    %v1374 = vunpack.c.l.b16 %v1338
    %v1375 = vunpack.c.l.b16 %v1339
    %v1376 = vunpack.c.l.b16 %v1340
    %v1377 = vunpack.c.l.b16 %v1341
    %v1378 = vunpack.c.l.b16 %v1342
    %v1379 = vunpack.c.l.b16 %v1343
    %v1380 = vpack.c.b16 %v1365, %v1364
    %v1381 = vpack.c.b16 %v1367, %v1366
    %v1382 = vpack.c.b16 %v1369, %v1368
    %v1383 = vpack.c.b16 %v1371, %v1370
    %v1384 = vpack.c.b16 %v1373, %v1372
    %v1385 = vpack.c.b16 %v1375, %v1374
    %v1386 = vpack.c.b16 %v1377, %v1376
    %v1387 = vpack.c.b16 %v1379, %v1378
    %1396 = vmatprep.subr.bf16.mxu0 0
    %1397 = vmatpush1.bf16.msra.mxu0 %v1380
    %1398 = vmatprep.subr.bf16.mxu0 0
    %1399 = vmatpush1.bf16.msra.mxu0 %v1381
    %1400 = vmatprep.subr.bf16.mxu0 0
    %1401 = vmatpush1.bf16.msra.mxu0 %v1382
    %1402 = vmatprep.subr.bf16.mxu0 0
    %1403 = vmatpush1.bf16.msra.mxu0 %v1383
    %1404 = vmatprep.subr.bf16.mxu0 0
    %1405 = vmatpush1.bf16.msra.mxu0 %v1384
    %1406 = vmatprep.subr.bf16.mxu0 0
    %1407 = vmatpush1.bf16.msra.mxu0 %v1385
    %1408 = vmatprep.subr.bf16.mxu0 0
    %1409 = vmatpush1.bf16.msra.mxu0 %v1386
    %1410 = vmatprep.subr.bf16.mxu0 0
    %1411 = vmatpush1.bf16.msra.mxu0 %v1387
    %1412 = vmatprep.subr.bf16.mxu0 0
    %1413 = vmatpush1.bf16.msra.mxu0 0
    %1414 = vmatprep.subr.bf16.mxu0 0
    %1415 = vmatpush1.bf16.msra.mxu0 0
    %1416 = vmatprep.subr.bf16.mxu0 0
    %1417 = vmatpush1.bf16.msra.mxu0 0
    %1418 = vmatprep.subr.bf16.mxu0 0
    %1419 = vmatpush1.bf16.msra.mxu0 0
    %1420 = vmatprep.subr.bf16.mxu0 0
    %1421 = vmatpush1.bf16.msra.mxu0 0
    %1422 = vmatprep.subr.bf16.mxu0 0
    %1423 = vmatpush1.bf16.msra.mxu0 0
    %1424 = vmatprep.subr.bf16.mxu0 0
    %1425 = vmatpush1.bf16.msra.mxu0 0
    %1426 = vmatprep.subr.bf16.mxu0 0
    %1427 = vmatpush1.bf16.msra.mxu0 0
    %1428 = vmatprep.mubr.bf16.mxu0 0
    %1429 = vmatmul.mubr.bf16.gmra.mrb[0].mxu0 %v1326
    %v1430 = vpop.f32.mrb[0].mxu0
    %v1431 = vadd.f32 %v1347, %v1430
    %v1432 = vpop.f32.mrb[0].mxu0
    %v1433 = vpop.f32.mrb[0].mxu0
    %v1434 = vadd.f32 %v1347, %v1433
    %v1435 = vpop.f32.mrb[0].mxu0
    %1436 = vmatprep.mubr.bf16.mxu0 0
    %1437 = vmatmul.mubr.bf16.gmra.mrb[0].mxu0 %v1327
    %v1438 = vpop.f32.mrb[0].mxu0
    %v1439 = vadd.f32 %v1347, %v1438
    %v1440 = vpop.f32.mrb[0].mxu0
    %v1441 = vpop.f32.mrb[0].mxu0
    %v1442 = vadd.f32 %v1347, %v1441
    %v1443 = vpop.f32.mrb[0].mxu0
    %1444 = vdwg.mxu0
    %1445 = vst [vmem:[#allocation14] sm:$0xff] %v1431
    %1446 = vst [vmem:[#allocation14 + $0x8] sm:$0xff] %v1434
    %1447 = vst [vmem:[#allocation14 + $0x10] sm:$0xff] %v1439
    %1448 = vst [vmem:[#allocation14 + $0x18] sm:$0xff] %v1442
    // Predicated region
    $region58: #{tpu_custom_call.1} parent=1 // pred_check
      _
    $region59: #{tpu_custom_call.1} parent=1 // pred_check_branch
      %1450 = sbr.rel (0) target = $region61
    $region60: #{tpu_custom_call.1} parent=1 // pred_region
      %s1452 = ssub.s32 512, 512
      %1453 = vsyncadd [#allocation4], %s1452
      %s1454 = sshll.u32 [#allocation14], 4
      %s1455 = int_to_ptr.vmem [resolvable:$true] %s1454
      %1460 = dma.vmem_to_hbm [thread:$0]  %s1455, 512, %s7, [#allocation4], 128, 128, 8
    $region61: #{tpu_custom_call.1} parent=1 // pred_fallthru
      _
    // Predicated region
    $region62: #{tpu_custom_call.1} parent=1 // pred_check
      _
    $region63: #{tpu_custom_call.1} parent=1 // pred_check_branch
      %1462 = sbr.rel (0) target = $region65
    $region64: #{tpu_custom_call.1} parent=1 // pred_region
      %1463 = dma.done [#allocation4], 512
    $region65: #{tpu_custom_call.1} parent=1 // pred_fallthru
      _
    %1464 = vsyncpa [#allocation3], 1
    %1465 = vsyncpa [#allocation6], 1
    %1466 = vsyncpa [#allocation9], 1
    %1467 = vsyncpa [#allocation12], 1
    %1468 = vsyncpa [#allocation4], 1

</llo_original>
